<compile_context>
chip_gen: v7x
topology: tpu7x:2x2x1
jax: 0.10.0
libtpu: 0.0.40
codegen_flags: <defaults>
</compile_context>

<pallas_src>
import functools

import jax
import jax.numpy as jnp
from jax.experimental import pallas as pl
from jax.experimental.pallas import tpu as pltpu


# ----------------------------------------------------------------------------
# Fused kernel: one grid step == one batch block, everything in VMEM.
# ----------------------------------------------------------------------------
def _up_fused_kernel(x1_ref, x2_ref, ahp_ref, mw_ref, su_ref, sd_ref,
                     b1_ref, b2_ref, t1_ref, t2_ref, o_ref, *, b_blk, h2):
    f32, bf16 = jnp.float32, jnp.bfloat16

    # ---- bilinear upsample + F.pad placement (folded into mw / ahp) -------
    x1 = x1_ref[0]                                       # bf16 (B*H1, W1*C1)
    xw = jnp.dot(x1, mw_ref[...], preferred_element_type=f32)     # (B*H1, W2*C1)
    up = jnp.dot(ahp_ref[...], xw.astype(bf16),
                 preferred_element_type=f32)             # (B*H2, W2*C1) f32

    # ---- implicit channel concat (algebraic): [x2 | up] on the lane axis --
    # conv1's band tensor is K-concatenated the same way, so one 128-wide
    # contraction replaces two 64-wide ones.
    xc = jnp.concatenate([x2_ref[0], up.astype(bf16)], axis=1)    # (M, 128) bf16

    # Row-shift matrices with cross-image halo zeros baked in (0/1 valued,
    # exact in bf16).  su: out[r] = x[r-1] (0 at each image's first row),
    # sd: out[r] = x[r+1] (0 at each image's last row).
    su = su_ref[...]
    sd = sd_ref[...]

    def conv_bn_relu(xb, band_ref, shift):
        # x shifted +-1 row, image boundaries zeroed -- done on the MXU so no
        # padded buffers / misaligned sublane slices are materialized.
        x_up = jnp.dot(su, xb, preferred_element_type=f32).astype(bf16)
        x_dn = jnp.dot(sd, xb, preferred_element_type=f32).astype(bf16)
        acc = jnp.dot(x_up, band_ref[0], preferred_element_type=f32)
        acc = acc + jnp.dot(xb, band_ref[1], preferred_element_type=f32)
        acc = acc + jnp.dot(x_dn, band_ref[2], preferred_element_type=f32)
        return jnp.maximum(acc + shift, 0.0)             # f32 epilogue

    y1 = conv_bn_relu(xc, b1_ref, t1_ref[...])           # (M, W2*Cmid) f32
    y2 = conv_bn_relu(y1.astype(bf16), b2_ref, t2_ref[...])  # (M, W2*Cout) f32

    # ---- lane-dense store: pack the B_blk images side-by-side on lanes ----
    o_ref[0] = jnp.concatenate(
        [y2[i * h2:(i + 1) * h2] for i in range(b_blk)], axis=1
    ).astype(o_ref.dtype)


# ----------------------------------------------------------------------------
# Host-side precompute helpers (all plain JAX, tiny)
# ----------------------------------------------------------------------------
def _interp_matrix(n_in, n_out):
    """Bilinear (align_corners=True) interpolation matrix: (n_out, n_in)."""
    if n_in == 1:
        return jnp.ones((n_out, 1), jnp.float32)
    pos = jnp.arange(n_out, dtype=jnp.float32) * (n_in - 1) / (n_out - 1)
    lo = jnp.clip(jnp.floor(pos).astype(jnp.int32), 0, n_in - 2)
    frac = pos - lo.astype(jnp.float32)
    rows = jnp.arange(n_out)
    mat = jnp.zeros((n_out, n_in), jnp.float32)
    mat = mat.at[rows, lo].add(1.0 - frac)
    mat = mat.at[rows, lo + 1].add(frac)
    return mat


def _placement_matrix(n_src, n_dst, offset):
    """One-hot (n_src, n_dst): src row i -> dst row i+offset (pad or crop)."""
    p = jnp.zeros((n_src, n_dst), jnp.float32)
    lo = max(0, -offset)
    hi = min(n_src, n_dst - offset)
    if hi > lo:
        idx = jnp.arange(lo, hi)
        p = p.at[idx, idx + offset].set(1.0)
    return p


def _row_shift_matrix(m_rows, h2, direction):
    """(m_rows, m_rows) 0/1 matrix: out[r] = x[r+direction], with rows that
    would cross an image boundary inside the batch block zeroed."""
    rows = jnp.arange(m_rows)
    src = rows + direction
    if direction < 0:
        valid = (rows % h2) != 0
    else:
        valid = (rows % h2) != (h2 - 1)
    src = jnp.clip(src, 0, m_rows - 1)
    mat = jnp.zeros((m_rows, m_rows), jnp.float32)
    return mat.at[rows, src].set(valid.astype(jnp.float32))


def _banded_conv_mats(w_oihw, width):
    """Band matrices B[dy] (3, width*Cin, width*Cout) such that a 3x3 conv
    (padding=1) on an [H, W*Cin] slab equals  sum_dy Xshift[dy] @ B[dy]."""
    cout, cin = w_oihw.shape[0], w_oihw.shape[1]
    wt = jnp.transpose(w_oihw, (2, 3, 1, 0)).astype(jnp.float32)  # (3,3,Ci,Co)
    mats = []
    for dy in range(3):
        b4 = jnp.zeros((width, cin, width, cout), jnp.float32)
        for dx in range(3):
            band = jnp.eye(width, k=1 - dx, dtype=jnp.float32)     # w_in = j+dx-1
            b4 = b4 + band[:, None, :, None] * wt[dy, dx][None, :, None, :]
        mats.append(b4.reshape(width * cin, width * cout))
    return jnp.stack(mats, axis=0)


# ----------------------------------------------------------------------------
# Up.forward (NCHW in / NCHW out, matching the PyTorch module)
# ----------------------------------------------------------------------------
def up_forward(x1, x2, params, eps=1e-5):
    n, c1, h1, w1 = x1.shape
    n2, c2, h2, w2 = x2.shape
    assert n == n2
    w1_oihw, w2_oihw = params["w1"], params["w2"]
    cmid, cin = w1_oihw.shape[0], w1_oihw.shape[1]
    cout = w2_oihw.shape[0]
    assert cin == c1 + c2

    # --- batch blocking: M = b_blk*h2 rows per grid step, >=2 grid steps ---
    b_blk = max(1, min(max(1, n // 2), max(1, 128 // h2)))
    nb = -(-n // b_blk)
    n_pad = nb * b_blk
    if n_pad > n:
        pad = ((0, n_pad - n), (0, 0), (0, 0), (0, 0))
        x1 = jnp.pad(x1, pad)
        x2 = jnp.pad(x2, pad)
    m_rows = b_blk * h2

    # BN folding (eval mode): scale into conv weights, shift as epilogue add.
    # TODO(synk): BatchNorm uses folded running stats (eval mode); training-
    #             mode batch statistics are not reproduced.
    s1 = params["g1"] / jnp.sqrt(params["v1"] + eps)
    t1 = params["b1"] - params["m1"] * s1
    s2 = params["g2"] / jnp.sqrt(params["v2"] + eps)
    t2 = params["b2"] - params["m2"] * s2
    w1f = w1_oihw.astype(jnp.float32) * s1[:, None, None, None]
    w2f = w2_oihw.astype(jnp.float32) * s2[:, None, None, None]

    # Upsample (+ F.pad semantics, incl. negative diffs = crop) matrices.
    h2u, w2u = 2 * h1, 2 * w1
    pad_top, pad_left = (h2 - h2u) // 2, (w2 - w2u) // 2
    ah = _interp_matrix(h1, 2 * h1)                                # (h2u, h1)
    aw = _interp_matrix(w1, 2 * w1)                                # (w2u, w1)
    ahp = _placement_matrix(h2u, h2, pad_top).T @ ah               # (h2, h1)
    ahp_b = jnp.kron(jnp.eye(b_blk, dtype=jnp.float32), ahp)       # block-diag
    mw_small = aw.T @ _placement_matrix(w2u, w2, pad_left)         # (w1, w2)
    mw = jnp.kron(mw_small, jnp.eye(c1, dtype=jnp.float32))        # (w1*c1, w2*c1)

    # Conv band matrices; the channel concat [x2, up] is fused by stacking the
    # two weight halves along K (conv is linear in input channels).
    b1 = jnp.concatenate([_banded_conv_mats(w1f[:, :c2], w2),      # x2 part
                          _banded_conv_mats(w1f[:, c2:], w2)],     # up part
                         axis=1)                                   # (3, w2*(c1+c2), w2*cmid)
    b2m = _banded_conv_mats(w2f, w2)                               # (3, w2*cmid, w2*cout)
    t1v = jnp.tile(t1, (w2,)).reshape(1, w2 * cmid).astype(jnp.float32)
    t2v = jnp.tile(t2, (w2,)).reshape(1, w2 * cout).astype(jnp.float32)

    # Row-shift (halo) matrices for the batch block.
    s_up = _row_shift_matrix(m_rows, h2, -1)                       # out[r]=x[r-1]
    s_dn = _row_shift_matrix(m_rows, h2, +1)                       # out[r]=x[r+1]

    # NCHW -> [rows, W*C] slabs (channels fastest on the lane axis), bf16.
    bf16 = jnp.bfloat16
    x1s = jnp.transpose(x1, (0, 2, 3, 1)).reshape(nb, b_blk * h1, w1 * c1)
    x2s = jnp.transpose(x2, (0, 2, 3, 1)).reshape(nb, b_blk * h2, w2 * c2)
    x1s, x2s = x1s.astype(bf16), x2s.astype(bf16)
    ahp_b, mw = ahp_b.astype(bf16), mw.astype(bf16)
    s_up, s_dn = s_up.astype(bf16), s_dn.astype(bf16)
    b1, b2m = b1.astype(bf16), b2m.astype(bf16)

    kernel = functools.partial(_up_fused_kernel, b_blk=b_blk, h2=h2)
    lanes_out = b_blk * w2 * cout
    out = pl.pallas_call(
        kernel,
        out_shape=jax.ShapeDtypeStruct((nb, h2, lanes_out), jnp.float32),
        grid_spec=pltpu.PrefetchScalarGridSpec(
            num_scalar_prefetch=0,
            grid=(nb,),
            in_specs=[
                pl.BlockSpec((1, b_blk * h1, w1 * c1), lambda b: (b, 0, 0)),
                pl.BlockSpec((1, b_blk * h2, w2 * c2), lambda b: (b, 0, 0)),
                pl.BlockSpec((m_rows, b_blk * h1), lambda b: (0, 0)),
                pl.BlockSpec((w1 * c1, w2 * c1), lambda b: (0, 0)),
                pl.BlockSpec((m_rows, m_rows), lambda b: (0, 0)),
                pl.BlockSpec((m_rows, m_rows), lambda b: (0, 0)),
                pl.BlockSpec((3, w2 * (c1 + c2), w2 * cmid), lambda b: (0, 0, 0)),
                pl.BlockSpec((3, w2 * cmid, w2 * cout), lambda b: (0, 0, 0)),
                pl.BlockSpec((1, w2 * cmid), lambda b: (0, 0)),
                pl.BlockSpec((1, w2 * cout), lambda b: (0, 0)),
            ],
            out_specs=pl.BlockSpec((1, h2, lanes_out), lambda b: (b, 0, 0)),
        ),
        compiler_params=pltpu.CompilerParams(
            dimension_semantics=("parallel",),
            vmem_limit_bytes=32 * 1024 * 1024,
        ),
    )(x1s, x2s, ahp_b, mw, s_up, s_dn, b1, b2m, t1v, t2v)

    # (nb, h2, b_blk*w2*cout) -> NCHW (single transpose, then drop batch pad).
    out = out.reshape(nb, h2, b_blk, w2, cout)
    out = jnp.transpose(out, (0, 2, 4, 1, 3)).reshape(n_pad, cout, h2, w2)
    return out[:n]


# ----------------------------------------------------------------------------
# Pure-JAX f32 reference (independent of the Pallas path) for a sanity check
# ----------------------------------------------------------------------------
def _ref_forward(x1, x2, params, eps=1e-5):
    n, c, h, w = x1.shape
    ah = _interp_matrix(h, 2 * h)
    aw = _interp_matrix(w, 2 * w)
    x1u = jnp.einsum("ip,ncpq,jq->ncij", ah, x1, aw)
    diff_y = x2.shape[2] - x1u.shape[2]
    diff_x = x2.shape[3] - x1u.shape[3]
    x1u = jnp.pad(x1u, ((0, 0), (0, 0),
                        (diff_y // 2, diff_y - diff_y // 2),
                        (diff_x // 2, diff_x - diff_x // 2)))
    x = jnp.concatenate([x2, x1u], axis=1)
    x = jnp.transpose(x, (0, 2, 3, 1))

    def conv_bn_relu(xin, wt, g, b, m, v):
        y = jax.lax.conv_general_dilated(
            xin, jnp.transpose(wt, (2, 3, 1, 0)),
            window_strides=(1, 1), padding="SAME",
            dimension_numbers=("NHWC", "HWIO", "NHWC"))
        y = (y - m) / jnp.sqrt(v + eps) * g + b
        return jnp.maximum(y, 0.0)

    y = conv_bn_relu(x, params["w1"], params["g1"], params["b1"],
                     params["m1"], params["v1"])
    y = conv_bn_relu(y, params["w2"], params["g2"], params["b2"],
                     params["m2"], params["v2"])
    return jnp.transpose(y, (0, 3, 1, 2))


# ----------------------------------------------------------------------------
# main
# ----------------------------------------------------------------------------
if __name__ == "__main__":
    # Up(in_channels=8, out_channels=4, bilinear=True)
    #   => mid_channels = in_channels // 2 = 4
    in_channels, out_channels = 8, 4
    mid_channels = in_channels // 2
    N, H1, W1 = 4, 8, 8            # x1 is the coarse feature map
    H2, W2 = 2 * H1, 2 * W1        # x2 is the skip connection

    key = jax.random.PRNGKey(0)
    ks = jax.random.split(key, 12)
    x1 = jax.random.normal(ks[0], (N, in_channels // 2, H1, W1), jnp.float32)
    x2 = jax.random.normal(ks[1], (N, in_channels // 2, H2, W2), jnp.float32)

    params = {
        # conv1: Conv2d(in_channels, mid_channels, 3, padding=1, bias=False)
        "w1": 0.1 * jax.random.normal(ks[2], (mid_channels, in_channels, 3, 3),
                                      jnp.float32),
        "g1": 1.0 + 0.1 * jax.random.normal(ks[3], (mid_channels,), jnp.float32),
        "b1": 0.1 * jax.random.normal(ks[4], (mid_channels,), jnp.float32),
        "m1": 0.1 * jax.random.normal(ks[5], (mid_channels,), jnp.float32),
        "v1": 0.5 + jnp.abs(jax.random.normal(ks[6], (mid_channels,),
                                              jnp.float32)),
        # conv2: Conv2d(mid_channels, out_channels, 3, padding=1, bias=False)
        "w2": 0.1 * jax.random.normal(ks[7], (out_channels, mid_channels, 3, 3),
                                      jnp.float32),
        "g2": 1.0 + 0.1 * jax.random.normal(ks[8], (out_channels,), jnp.float32),
        "b2": 0.1 * jax.random.normal(ks[9], (out_channels,), jnp.float32),
        "m2": 0.1 * jax.random.normal(ks[10], (out_channels,), jnp.float32),
        "v2": 0.5 + jnp.abs(jax.random.normal(ks[11], (out_channels,),
                                              jnp.float32)),
    }

    out = jax.block_until_ready(up_forward(x1, x2, params))
    assert out.shape == (N, out_channels, H2, W2), out.shape

    # bf16 operands (f32 accumulation / epilogue) vs. f32 reference: loose tol.
    ref = jax.block_until_ready(_ref_forward(x1, x2, params))
    max_err = float(jnp.max(jnp.abs(out - ref)))
    assert jnp.allclose(out, ref, atol=1e-1, rtol=1e-1), max_err

    print("KERNEL_OK")
</pallas_src>

<mosaic_0001>
module attributes {stable_mosaic.version = 11 : i64} {
  func.func @_up_fused_kernel(%arg0: i32, %arg1: memref<1x16x32xbf16, #tpu.memory_space<vmem>>, %arg2: memref<1x32x64xbf16, #tpu.memory_space<vmem>>, %arg3: memref<32x16xbf16, #tpu.memory_space<vmem>>, %arg4: memref<32x64xbf16, #tpu.memory_space<vmem>>, %arg5: memref<32x32xbf16, #tpu.memory_space<vmem>>, %arg6: memref<32x32xbf16, #tpu.memory_space<vmem>>, %arg7: memref<3x128x64xbf16, #tpu.memory_space<vmem>>, %arg8: memref<3x64x64xbf16, #tpu.memory_space<vmem>>, %arg9: memref<1x64xf32, #tpu.memory_space<vmem>>, %arg10: memref<1x64xf32, #tpu.memory_space<vmem>>, %arg11: memref<1x16x128xf32, #tpu.memory_space<vmem>>) attributes {dimension_semantics = [#tpu.dimension_semantics<parallel>], iteration_bounds = array<i64: 2>, scalar_prefetch = 0 : i64, scratch_operands = 0 : i64, tpu.core_type = #tpu.core_type<tc>, window_params = [{transform_indices = @transform_0, window_bounds = array<i64: 1, 16, 32>}, {transform_indices = @transform_1, window_bounds = array<i64: 1, 32, 64>}, {pipeline_mode = #tpu.pipeline_mode<synchronous>, transform_indices = @transform_2, window_bounds = array<i64: 32, 16>}, {pipeline_mode = #tpu.pipeline_mode<synchronous>, transform_indices = @transform_3, window_bounds = array<i64: 32, 64>}, {pipeline_mode = #tpu.pipeline_mode<synchronous>, transform_indices = @transform_4, window_bounds = array<i64: 32, 32>}, {pipeline_mode = #tpu.pipeline_mode<synchronous>, transform_indices = @transform_5, window_bounds = array<i64: 32, 32>}, {pipeline_mode = #tpu.pipeline_mode<synchronous>, transform_indices = @transform_6, window_bounds = array<i64: 3, 128, 64>}, {pipeline_mode = #tpu.pipeline_mode<synchronous>, transform_indices = @transform_7, window_bounds = array<i64: 3, 64, 64>}, {pipeline_mode = #tpu.pipeline_mode<synchronous>, transform_indices = @transform_8, window_bounds = array<i64: 1, 64>}, {pipeline_mode = #tpu.pipeline_mode<synchronous>, transform_indices = @transform_9, window_bounds = array<i64: 1, 64>}, {transform_indices = @transform_10, window_bounds = array<i64: 1, 16, 128>}]} {
    %c0 = arith.constant 0 : index
    %c0_0 = arith.constant 0 : index
    %c0_1 = arith.constant 0 : index
    %0 = vector.load %arg1[%c0, %c0_0, %c0_1] : memref<1x16x32xbf16, #tpu.memory_space<vmem>>, vector<1x16x32xbf16>
    %1 = vector.shape_cast %0 : vector<1x16x32xbf16> to vector<16x32xbf16>
    %c0_2 = arith.constant 0 : index
    %c0_3 = arith.constant 0 : index
    %2 = vector.load %arg4[%c0_2, %c0_3] : memref<32x64xbf16, #tpu.memory_space<vmem>>, vector<32x64xbf16>
    %cst = arith.constant dense<0.000000e+00> : vector<16x64xf32>
    %3 = tpu.matmul %1, %2, %cst {dimension_numbers = #tpu.dot_dimension_numbers<[1], [0], [0], [1], [0, 0, 1, 1], [], []>} : vector<16x32xbf16>, vector<32x64xbf16>, vector<16x64xf32> -> vector<16x64xf32>
    %c0_4 = arith.constant 0 : index
    %c0_5 = arith.constant 0 : index
    %4 = vector.load %arg3[%c0_4, %c0_5] : memref<32x16xbf16, #tpu.memory_space<vmem>>, vector<32x16xbf16>
    %5 = arith.truncf %3 : vector<16x64xf32> to vector<16x64xbf16>
    %cst_6 = arith.constant dense<0.000000e+00> : vector<32x64xf32>
    %6 = tpu.matmul %4, %5, %cst_6 {dimension_numbers = #tpu.dot_dimension_numbers<[1], [0], [0], [1], [0, 0, 1, 1], [], []>} : vector<32x16xbf16>, vector<16x64xbf16>, vector<32x64xf32> -> vector<32x64xf32>
    %c0_7 = arith.constant 0 : index
    %c0_8 = arith.constant 0 : index
    %c0_9 = arith.constant 0 : index
    %7 = vector.load %arg2[%c0_7, %c0_8, %c0_9] : memref<1x32x64xbf16, #tpu.memory_space<vmem>>, vector<1x32x64xbf16>
    %8 = vector.shape_cast %7 : vector<1x32x64xbf16> to vector<32x64xbf16>
    %9 = arith.truncf %6 : vector<32x64xf32> to vector<32x64xbf16>
    %10 = tpu.concatenate %8, %9 in 1 : vector<32x64xbf16>, vector<32x64xbf16> -> vector<32x128xbf16>
    %c0_10 = arith.constant 0 : index
    %c0_11 = arith.constant 0 : index
    %11 = vector.load %arg5[%c0_10, %c0_11] : memref<32x32xbf16, #tpu.memory_space<vmem>>, vector<32x32xbf16>
    %c0_12 = arith.constant 0 : index
    %c0_13 = arith.constant 0 : index
    %12 = vector.load %arg6[%c0_12, %c0_13] : memref<32x32xbf16, #tpu.memory_space<vmem>>, vector<32x32xbf16>
    %c0_14 = arith.constant 0 : index
    %c0_15 = arith.constant 0 : index
    %13 = vector.load %arg9[%c0_14, %c0_15] : memref<1x64xf32, #tpu.memory_space<vmem>>, vector<1x64xf32>
    %cst_16 = arith.constant dense<0.000000e+00> : vector<32x128xf32>
    %14 = tpu.matmul %11, %10, %cst_16 {dimension_numbers = #tpu.dot_dimension_numbers<[1], [0], [0], [1], [0, 0, 1, 1], [], []>} : vector<32x32xbf16>, vector<32x128xbf16>, vector<32x128xf32> -> vector<32x128xf32>
    %15 = arith.truncf %14 : vector<32x128xf32> to vector<32x128xbf16>
    %cst_17 = arith.constant dense<0.000000e+00> : vector<32x128xf32>
    %16 = tpu.matmul %12, %10, %cst_17 {dimension_numbers = #tpu.dot_dimension_numbers<[1], [0], [0], [1], [0, 0, 1, 1], [], []>} : vector<32x32xbf16>, vector<32x128xbf16>, vector<32x128xf32> -> vector<32x128xf32>
    %17 = arith.truncf %16 : vector<32x128xf32> to vector<32x128xbf16>
    %c0_18 = arith.constant 0 : index
    %c0_19 = arith.constant 0 : index
    %c0_20 = arith.constant 0 : index
    %18 = vector.load %arg7[%c0_18, %c0_19, %c0_20] : memref<3x128x64xbf16, #tpu.memory_space<vmem>>, vector<1x128x64xbf16>
    %19 = vector.shape_cast %18 : vector<1x128x64xbf16> to vector<128x64xbf16>
    %cst_21 = arith.constant dense<0.000000e+00> : vector<32x64xf32>
    %20 = tpu.matmul %15, %19, %cst_21 {dimension_numbers = #tpu.dot_dimension_numbers<[1], [0], [0], [1], [0, 0, 1, 1], [], []>} : vector<32x128xbf16>, vector<128x64xbf16>, vector<32x64xf32> -> vector<32x64xf32>
    %c1 = arith.constant 1 : index
    %c0_22 = arith.constant 0 : index
    %c0_23 = arith.constant 0 : index
    %21 = vector.load %arg7[%c1, %c0_22, %c0_23] : memref<3x128x64xbf16, #tpu.memory_space<vmem>>, vector<1x128x64xbf16>
    %22 = vector.shape_cast %21 : vector<1x128x64xbf16> to vector<128x64xbf16>
    %cst_24 = arith.constant dense<0.000000e+00> : vector<32x64xf32>
    %23 = tpu.matmul %10, %22, %cst_24 {dimension_numbers = #tpu.dot_dimension_numbers<[1], [0], [0], [1], [0, 0, 1, 1], [], []>} : vector<32x128xbf16>, vector<128x64xbf16>, vector<32x64xf32> -> vector<32x64xf32>
    %24 = arith.addf %20, %23 : vector<32x64xf32>
    %c2 = arith.constant 2 : index
    %c0_25 = arith.constant 0 : index
    %c0_26 = arith.constant 0 : index
    %25 = vector.load %arg7[%c2, %c0_25, %c0_26] : memref<3x128x64xbf16, #tpu.memory_space<vmem>>, vector<1x128x64xbf16>
    %26 = vector.shape_cast %25 : vector<1x128x64xbf16> to vector<128x64xbf16>
    %cst_27 = arith.constant dense<0.000000e+00> : vector<32x64xf32>
    %27 = tpu.matmul %17, %26, %cst_27 {dimension_numbers = #tpu.dot_dimension_numbers<[1], [0], [0], [1], [0, 0, 1, 1], [], []>} : vector<32x128xbf16>, vector<128x64xbf16>, vector<32x64xf32> -> vector<32x64xf32>
    %28 = arith.addf %24, %27 : vector<32x64xf32>
    %29 = vector.broadcast %13 : vector<1x64xf32> to vector<32x64xf32>
    %30 = arith.addf %28, %29 : vector<32x64xf32>
    %cst_28 = arith.constant 0.000000e+00 : f32
    %31 = vector.broadcast %cst_28 : f32 to vector<32x64xf32>
    %32 = arith.maximumf %30, %31 : vector<32x64xf32>
    %33 = arith.truncf %32 : vector<32x64xf32> to vector<32x64xbf16>
    %c0_29 = arith.constant 0 : index
    %c0_30 = arith.constant 0 : index
    %34 = vector.load %arg10[%c0_29, %c0_30] : memref<1x64xf32, #tpu.memory_space<vmem>>, vector<1x64xf32>
    %cst_31 = arith.constant dense<0.000000e+00> : vector<32x64xf32>
    %35 = tpu.matmul %11, %33, %cst_31 {dimension_numbers = #tpu.dot_dimension_numbers<[1], [0], [0], [1], [0, 0, 1, 1], [], []>} : vector<32x32xbf16>, vector<32x64xbf16>, vector<32x64xf32> -> vector<32x64xf32>
    %36 = arith.truncf %35 : vector<32x64xf32> to vector<32x64xbf16>
    %cst_32 = arith.constant dense<0.000000e+00> : vector<32x64xf32>
    %37 = tpu.matmul %12, %33, %cst_32 {dimension_numbers = #tpu.dot_dimension_numbers<[1], [0], [0], [1], [0, 0, 1, 1], [], []>} : vector<32x32xbf16>, vector<32x64xbf16>, vector<32x64xf32> -> vector<32x64xf32>
    %38 = arith.truncf %37 : vector<32x64xf32> to vector<32x64xbf16>
    %c0_33 = arith.constant 0 : index
    %c0_34 = arith.constant 0 : index
    %c0_35 = arith.constant 0 : index
    %39 = vector.load %arg8[%c0_33, %c0_34, %c0_35] : memref<3x64x64xbf16, #tpu.memory_space<vmem>>, vector<1x64x64xbf16>
    %40 = vector.shape_cast %39 : vector<1x64x64xbf16> to vector<64x64xbf16>
    %cst_36 = arith.constant dense<0.000000e+00> : vector<32x64xf32>
    %41 = tpu.matmul %36, %40, %cst_36 {dimension_numbers = #tpu.dot_dimension_numbers<[1], [0], [0], [1], [0, 0, 1, 1], [], []>} : vector<32x64xbf16>, vector<64x64xbf16>, vector<32x64xf32> -> vector<32x64xf32>
    %c1_37 = arith.constant 1 : index
    %c0_38 = arith.constant 0 : index
    %c0_39 = arith.constant 0 : index
    %42 = vector.load %arg8[%c1_37, %c0_38, %c0_39] : memref<3x64x64xbf16, #tpu.memory_space<vmem>>, vector<1x64x64xbf16>
    %43 = vector.shape_cast %42 : vector<1x64x64xbf16> to vector<64x64xbf16>
    %cst_40 = arith.constant dense<0.000000e+00> : vector<32x64xf32>
    %44 = tpu.matmul %33, %43, %cst_40 {dimension_numbers = #tpu.dot_dimension_numbers<[1], [0], [0], [1], [0, 0, 1, 1], [], []>} : vector<32x64xbf16>, vector<64x64xbf16>, vector<32x64xf32> -> vector<32x64xf32>
    %45 = arith.addf %41, %44 : vector<32x64xf32>
    %c2_41 = arith.constant 2 : index
    %c0_42 = arith.constant 0 : index
    %c0_43 = arith.constant 0 : index
    %46 = vector.load %arg8[%c2_41, %c0_42, %c0_43] : memref<3x64x64xbf16, #tpu.memory_space<vmem>>, vector<1x64x64xbf16>
    %47 = vector.shape_cast %46 : vector<1x64x64xbf16> to vector<64x64xbf16>
    %cst_44 = arith.constant dense<0.000000e+00> : vector<32x64xf32>
    %48 = tpu.matmul %38, %47, %cst_44 {dimension_numbers = #tpu.dot_dimension_numbers<[1], [0], [0], [1], [0, 0, 1, 1], [], []>} : vector<32x64xbf16>, vector<64x64xbf16>, vector<32x64xf32> -> vector<32x64xf32>
    %49 = arith.addf %45, %48 : vector<32x64xf32>
    %50 = vector.broadcast %34 : vector<1x64xf32> to vector<32x64xf32>
    %51 = arith.addf %49, %50 : vector<32x64xf32>
    %cst_45 = arith.constant 0.000000e+00 : f32
    %52 = vector.broadcast %cst_45 : f32 to vector<32x64xf32>
    %53 = arith.maximumf %51, %52 : vector<32x64xf32>
    %54 = vector.extract_strided_slice %53 {offsets = [0, 0], sizes = [16, 64], strides = [1, 1]} : vector<32x64xf32> to vector<16x64xf32>
    %55 = vector.extract_strided_slice %53 {offsets = [16, 0], sizes = [16, 64], strides = [1, 1]} : vector<32x64xf32> to vector<16x64xf32>
    %56 = tpu.concatenate %54, %55 in 1 : vector<16x64xf32>, vector<16x64xf32> -> vector<16x128xf32>
    %c0_46 = arith.constant 0 : index
    %c0_47 = arith.constant 0 : index
    %c0_48 = arith.constant 0 : index
    %57 = vector.load %arg11[%c0_46, %c0_47, %c0_48] : memref<1x16x128xf32, #tpu.memory_space<vmem>>, vector<1x16x128xf32>
    %58 = vector.shape_cast %57 : vector<1x16x128xf32> to vector<16x128xf32>
    %59 = vector.shape_cast %56 : vector<16x128xf32> to vector<1x16x128xf32>
    tpu.vector_store %arg11[%c0_46, %c0_47, %c0_48], %59 {strides = array<i32>} : memref<1x16x128xf32, #tpu.memory_space<vmem>>, vector<1x16x128xf32>,
    return
  }
  func.func @transform_0(%arg0: i32) -> (i32, i32, i32) {
    %c0_i32 = arith.constant 0 : i32
    %c0_i32_0 = arith.constant 0 : i32
    %c0_i32_1 = arith.constant 0 : i32
    return %arg0, %c0_i32, %c0_i32_0 : i32, i32, i32
  }
  func.func @transform_1(%arg0: i32) -> (i32, i32, i32) {
    %c0_i32 = arith.constant 0 : i32
    %c0_i32_0 = arith.constant 0 : i32
    %c0_i32_1 = arith.constant 0 : i32
    return %arg0, %c0_i32, %c0_i32_0 : i32, i32, i32
  }
  func.func @transform_2(%arg0: i32) -> (i32, i32) {
    %c0_i32 = arith.constant 0 : i32
    %c0_i32_0 = arith.constant 0 : i32
    %c0_i32_1 = arith.constant 0 : i32
    return %c0_i32, %c0_i32_0 : i32, i32
  }
  func.func @transform_3(%arg0: i32) -> (i32, i32) {
    %c0_i32 = arith.constant 0 : i32
    %c0_i32_0 = arith.constant 0 : i32
    %c0_i32_1 = arith.constant 0 : i32
    return %c0_i32, %c0_i32_0 : i32, i32
  }
  func.func @transform_4(%arg0: i32) -> (i32, i32) {
    %c0_i32 = arith.constant 0 : i32
    %c0_i32_0 = arith.constant 0 : i32
    %c0_i32_1 = arith.constant 0 : i32
    return %c0_i32, %c0_i32_0 : i32, i32
  }
  func.func @transform_5(%arg0: i32) -> (i32, i32) {
    %c0_i32 = arith.constant 0 : i32
    %c0_i32_0 = arith.constant 0 : i32
    %c0_i32_1 = arith.constant 0 : i32
    return %c0_i32, %c0_i32_0 : i32, i32
  }
  func.func @transform_6(%arg0: i32) -> (i32, i32, i32) {
    %c0_i32 = arith.constant 0 : i32
    %c0_i32_0 = arith.constant 0 : i32
    %c0_i32_1 = arith.constant 0 : i32
    %c0_i32_2 = arith.constant 0 : i32
    return %c0_i32, %c0_i32_0, %c0_i32_1 : i32, i32, i32
  }
  func.func @transform_7(%arg0: i32) -> (i32, i32, i32) {
    %c0_i32 = arith.constant 0 : i32
    %c0_i32_0 = arith.constant 0 : i32
    %c0_i32_1 = arith.constant 0 : i32
    %c0_i32_2 = arith.constant 0 : i32
    return %c0_i32, %c0_i32_0, %c0_i32_1 : i32, i32, i32
  }
  func.func @transform_8(%arg0: i32) -> (i32, i32) {
    %c0_i32 = arith.constant 0 : i32
    %c0_i32_0 = arith.constant 0 : i32
    %c0_i32_1 = arith.constant 0 : i32
    return %c0_i32, %c0_i32_0 : i32, i32
  }
  func.func @transform_9(%arg0: i32) -> (i32, i32) {
    %c0_i32 = arith.constant 0 : i32
    %c0_i32_0 = arith.constant 0 : i32
    %c0_i32_1 = arith.constant 0 : i32
    return %c0_i32, %c0_i32_0 : i32, i32
  }
  func.func @transform_10(%arg0: i32) -> (i32, i32, i32) {
    %c0_i32 = arith.constant 0 : i32
    %c0_i32_0 = arith.constant 0 : i32
    %c0_i32_1 = arith.constant 0 : i32
    return %arg0, %c0_i32, %c0_i32_0 : i32, i32, i32
  }
}

</mosaic_0001>

<llo_original>
// kernel: tpu_custom_call.1
$region0: #{tpu_custom_call.1}
  #allocation0 [shape = 'u32[]', space=smem, size = 0x4, offset = 0x4, fixed_abs, tag = 'smem constant byte address 0x4 - core index']
  #allocation1 [shape = 'u32[144,128]{1,0:T(1,128)}', space=vmem, size = 0x12000, scoped, tag = 'internal scratch']
  %s0 = inlined_call_operand.vmem [shape: bf16[2,16,32], index: 0, kind: input, shape index: {}]
  %s1 = inlined_call_operand.vmem [shape: bf16[2,32,64], index: 1, kind: input, shape index: {}]
  %s2 = inlined_call_operand.vmem [shape: bf16[32,16], index: 2, kind: input, shape index: {}]
  %s3 = inlined_call_operand.vmem [shape: bf16[32,64], index: 3, kind: input, shape index: {}]
  %s4 = inlined_call_operand.vmem [shape: bf16[32,32], index: 4, kind: input, shape index: {}]
  %s5 = inlined_call_operand.vmem [shape: bf16[32,32], index: 5, kind: input, shape index: {}]
  %s6 = inlined_call_operand.vmem [shape: bf16[3,128,64], index: 6, kind: input, shape index: {}]
  %s7 = inlined_call_operand.vmem [shape: bf16[3,64,64], index: 7, kind: input, shape index: {}]
  %s8 = inlined_call_operand.vmem [shape: f32[1,64], index: 8, kind: input, shape index: {}]
  %s9 = inlined_call_operand.vmem [shape: f32[1,64], index: 9, kind: input, shape index: {}]
  %s10 = inlined_call_operand.hbm [shape: f32[2,16,128], index: 10, kind: output, shape index: {}]
  %s11 = sld [smem:[#allocation0]]
  $region73: #{tpu_custom_call.1} parent=0
    _
  %s13 = ssub.s32 1, %s11
  %s14 = scalar_select 0, %s13, %s11
  $region1: #{tpu_custom_call.1} parent=0
    #allocation2 [shape = 'u8[16384]{0}', space=vmem, size = 0x4000, scoped, tag = 'output window, operand 0']
    #allocation3 [shape = 's32[2]{0}', space=sflag, size = 0x8, scoped, tag = 'scoped memory for tpu_custom_call.1']
    %15 = vsyncpa [#allocation3], 0
    %s16 = scalar_lea.sflag [#allocation3], 1
    %17 = vsyncpa %s16, 0
    loop: start=0, step=1, limit=4
    $region2: #{tpu_custom_call.1} parent=1 // loop_pre_header
      _
    $region3: #{tpu_custom_call.1} parent=1 // loop_header
      %s19 = sphi 0, %s23
      %p20 = scmp.ge.s32.totalorder %s19, 4
      %s29 = sphi 0, %s31
      %s32 = sphi 0, %s29
      %s33 = sphi 0, %s32
      %s49 = sphi 0, %s33
      %s55 = sphi 0, %s57
      %s58 = sphi 0, %s55
      %s59 = sphi 0, %s58
      %s75 = sphi 0, %s59
      %s79 = sphi 0, %s79
      %s81 = sphi 0, %s79
      %s82 = sphi 0, %s81
      %s96 = sphi 0, %s82
      %s100 = sphi 0, %s100
      %s102 = sphi 0, %s100
      %s103 = sphi 0, %s102
      %s117 = sphi 0, %s103
      %s121 = sphi 0, %s121
      %s123 = sphi 0, %s121
      %s124 = sphi 0, %s123
      %s138 = sphi 0, %s124
      %s142 = sphi 0, %s142
      %s144 = sphi 0, %s142
      %s145 = sphi 0, %s144
      %s159 = sphi 0, %s145
      %s163 = sphi 0, %s163
      %s165 = sphi 0, %s163
      %s166 = sphi 0, %s165
      %s180 = sphi 0, %s166
      %s184 = sphi 0, %s184
      %s186 = sphi 0, %s184
      %s187 = sphi 0, %s186
      %s201 = sphi 0, %s187
      %s205 = sphi 0, %s205
      %s207 = sphi 0, %s205
      %s208 = sphi 0, %s207
      %s222 = sphi 0, %s208
      %s226 = sphi 0, %s226
      %s228 = sphi 0, %s226
      %s229 = sphi 0, %s228
      %s243 = sphi 0, %s229
      %s249 = sphi 0, %s251
      %s252 = sphi 0, %s249
      %s253 = sphi 0, %s252
      %s269 = sphi 0, %s253
    $region4: #{tpu_custom_call.1} parent=1 // loop_header_branch
      %22 = sbr.rel (%p20) target = $region8
    $region5: #{tpu_custom_call.1} parent=1 // loop_body
      %s24 = ssub.s32 %s19, 1
      %s25 = ssub.s32 %s19, 2
      %s26 = sadd.s32 %s19, 1
      %s27 = ssub.s32 %s19, %s26
      %p28 = scmp.eq.s32.totalorder %s27, 0
      %s30 = sadd.s32 %s29, 1
      %s31 = scalar_select %p28, %s29, %s30
      %p34 = pneg %p28
      %p35 = scmp.eq.s32.totalorder %s19, 1
      %p36 = por %p34, %p35
      %p37 = scmp.ne.s32.totalorder %s29, %s32
      %p38 = scmp.eq.s32.totalorder %s19, 0
      %p39 = por %p37, %p38
      %p40 = scmp.ne.s32.totalorder %s29, %s32
      %p41 = scmp.eq.s32.totalorder %s24, 1
      %p42 = por %p40, %p41
      %p43 = scmp.ne.s32.totalorder %s32, %s33
      %p44 = scmp.eq.s32.totalorder %s24, 0
      %p45 = por %p43, %p44
      %p46 = scmp.ne.s32.totalorder %s32, %s33
      %p47 = scmp.eq.s32.totalorder %s25, 1
      %p48 = por %p46, %p47
      %p50 = scmp.ne.s32.totalorder %s33, %s49
      %p51 = scmp.eq.s32.totalorder %s25, 0
      %p52 = por %p50, %p51
      %s53 = ssub.s32 %s19, %s26
      %p54 = scmp.eq.s32.totalorder %s53, 0
      %s56 = sadd.s32 %s55, 1
      %s57 = scalar_select %p54, %s55, %s56
      %p60 = pneg %p54
      %p61 = scmp.eq.s32.totalorder %s19, 1
      %p62 = por %p60, %p61
      %p63 = scmp.ne.s32.totalorder %s55, %s58
      %p64 = scmp.eq.s32.totalorder %s19, 0
      %p65 = por %p63, %p64
      %p66 = scmp.ne.s32.totalorder %s55, %s58
      %p67 = scmp.eq.s32.totalorder %s24, 1
      %p68 = por %p66, %p67
      %p69 = scmp.ne.s32.totalorder %s58, %s59
      %p70 = scmp.eq.s32.totalorder %s24, 0
      %p71 = por %p69, %p70
      %p72 = scmp.ne.s32.totalorder %s58, %s59
      %p73 = scmp.eq.s32.totalorder %s25, 1
      %p74 = por %p72, %p73
      %p76 = scmp.ne.s32.totalorder %s59, %s75
      %p77 = scmp.eq.s32.totalorder %s25, 0
      %p78 = por %p76, %p77
      %s80 = sadd.s32 %s79, 1
      %p83 = scmp.eq.s32.totalorder %s19, 1
      %p84 = scmp.ne.s32.totalorder %s79, %s81
      %p85 = scmp.eq.s32.totalorder %s19, 0
      %p86 = por %p84, %p85
      %p87 = scmp.ne.s32.totalorder %s79, %s81
      %p88 = scmp.eq.s32.totalorder %s24, 1
      %p89 = por %p87, %p88
      %p90 = scmp.ne.s32.totalorder %s81, %s82
      %p91 = scmp.eq.s32.totalorder %s24, 0
      %p92 = por %p90, %p91
      %p93 = scmp.ne.s32.totalorder %s81, %s82
      %p94 = scmp.eq.s32.totalorder %s25, 1
      %p95 = por %p93, %p94
      %p97 = scmp.ne.s32.totalorder %s82, %s96
      %p98 = scmp.eq.s32.totalorder %s25, 0
      %p99 = por %p97, %p98
      %s101 = sadd.s32 %s100, 1
      %p104 = scmp.eq.s32.totalorder %s19, 1
      %p105 = scmp.ne.s32.totalorder %s100, %s102
      %p106 = scmp.eq.s32.totalorder %s19, 0
      %p107 = por %p105, %p106
      %p108 = scmp.ne.s32.totalorder %s100, %s102
      %p109 = scmp.eq.s32.totalorder %s24, 1
      %p110 = por %p108, %p109
      %p111 = scmp.ne.s32.totalorder %s102, %s103
      %p112 = scmp.eq.s32.totalorder %s24, 0
      %p113 = por %p111, %p112
      %p114 = scmp.ne.s32.totalorder %s102, %s103
      %p115 = scmp.eq.s32.totalorder %s25, 1
      %p116 = por %p114, %p115
      %p118 = scmp.ne.s32.totalorder %s103, %s117
      %p119 = scmp.eq.s32.totalorder %s25, 0
      %p120 = por %p118, %p119
      %s122 = sadd.s32 %s121, 1
      %p125 = scmp.eq.s32.totalorder %s19, 1
      %p126 = scmp.ne.s32.totalorder %s121, %s123
      %p127 = scmp.eq.s32.totalorder %s19, 0
      %p128 = por %p126, %p127
      %p129 = scmp.ne.s32.totalorder %s121, %s123
      %p130 = scmp.eq.s32.totalorder %s24, 1
      %p131 = por %p129, %p130
      %p132 = scmp.ne.s32.totalorder %s123, %s124
      %p133 = scmp.eq.s32.totalorder %s24, 0
      %p134 = por %p132, %p133
      %p135 = scmp.ne.s32.totalorder %s123, %s124
      %p136 = scmp.eq.s32.totalorder %s25, 1
      %p137 = por %p135, %p136
      %p139 = scmp.ne.s32.totalorder %s124, %s138
      %p140 = scmp.eq.s32.totalorder %s25, 0
      %p141 = por %p139, %p140
      %s143 = sadd.s32 %s142, 1
      %p146 = scmp.eq.s32.totalorder %s19, 1
      %p147 = scmp.ne.s32.totalorder %s142, %s144
      %p148 = scmp.eq.s32.totalorder %s19, 0
      %p149 = por %p147, %p148
      %p150 = scmp.ne.s32.totalorder %s142, %s144
      %p151 = scmp.eq.s32.totalorder %s24, 1
      %p152 = por %p150, %p151
      %p153 = scmp.ne.s32.totalorder %s144, %s145
      %p154 = scmp.eq.s32.totalorder %s24, 0
      %p155 = por %p153, %p154
      %p156 = scmp.ne.s32.totalorder %s144, %s145
      %p157 = scmp.eq.s32.totalorder %s25, 1
      %p158 = por %p156, %p157
      %p160 = scmp.ne.s32.totalorder %s145, %s159
      %p161 = scmp.eq.s32.totalorder %s25, 0
      %p162 = por %p160, %p161
      %s164 = sadd.s32 %s163, 1
      %p167 = scmp.eq.s32.totalorder %s19, 1
      %p168 = scmp.ne.s32.totalorder %s163, %s165
      %p169 = scmp.eq.s32.totalorder %s19, 0
      %p170 = por %p168, %p169
      %p171 = scmp.ne.s32.totalorder %s163, %s165
      %p172 = scmp.eq.s32.totalorder %s24, 1
      %p173 = por %p171, %p172
      %p174 = scmp.ne.s32.totalorder %s165, %s166
      %p175 = scmp.eq.s32.totalorder %s24, 0
      %p176 = por %p174, %p175
      %p177 = scmp.ne.s32.totalorder %s165, %s166
      %p178 = scmp.eq.s32.totalorder %s25, 1
      %p179 = por %p177, %p178
      %p181 = scmp.ne.s32.totalorder %s166, %s180
      %p182 = scmp.eq.s32.totalorder %s25, 0
      %p183 = por %p181, %p182
      %s185 = sadd.s32 %s184, 1
      %p188 = scmp.eq.s32.totalorder %s19, 1
      %p189 = scmp.ne.s32.totalorder %s184, %s186
      %p190 = scmp.eq.s32.totalorder %s19, 0
      %p191 = por %p189, %p190
      %p192 = scmp.ne.s32.totalorder %s184, %s186
      %p193 = scmp.eq.s32.totalorder %s24, 1
      %p194 = por %p192, %p193
      %p195 = scmp.ne.s32.totalorder %s186, %s187
      %p196 = scmp.eq.s32.totalorder %s24, 0
      %p197 = por %p195, %p196
      %p198 = scmp.ne.s32.totalorder %s186, %s187
      %p199 = scmp.eq.s32.totalorder %s25, 1
      %p200 = por %p198, %p199
      %p202 = scmp.ne.s32.totalorder %s187, %s201
      %p203 = scmp.eq.s32.totalorder %s25, 0
      %p204 = por %p202, %p203
      %s206 = sadd.s32 %s205, 1
      %p209 = scmp.eq.s32.totalorder %s19, 1
      %p210 = scmp.ne.s32.totalorder %s205, %s207
      %p211 = scmp.eq.s32.totalorder %s19, 0
      %p212 = por %p210, %p211
      %p213 = scmp.ne.s32.totalorder %s205, %s207
      %p214 = scmp.eq.s32.totalorder %s24, 1
      %p215 = por %p213, %p214
      %p216 = scmp.ne.s32.totalorder %s207, %s208
      %p217 = scmp.eq.s32.totalorder %s24, 0
      %p218 = por %p216, %p217
      %p219 = scmp.ne.s32.totalorder %s207, %s208
      %p220 = scmp.eq.s32.totalorder %s25, 1
      %p221 = por %p219, %p220
      %p223 = scmp.ne.s32.totalorder %s208, %s222
      %p224 = scmp.eq.s32.totalorder %s25, 0
      %p225 = por %p223, %p224
      %s227 = sadd.s32 %s226, 1
      %p230 = scmp.eq.s32.totalorder %s19, 1
      %p231 = scmp.ne.s32.totalorder %s226, %s228
      %p232 = scmp.eq.s32.totalorder %s19, 0
      %p233 = por %p231, %p232
      %p234 = scmp.ne.s32.totalorder %s226, %s228
      %p235 = scmp.eq.s32.totalorder %s24, 1
      %p236 = por %p234, %p235
      %p237 = scmp.ne.s32.totalorder %s228, %s229
      %p238 = scmp.eq.s32.totalorder %s24, 0
      %p239 = por %p237, %p238
      %p240 = scmp.ne.s32.totalorder %s228, %s229
      %p241 = scmp.eq.s32.totalorder %s25, 1
      %p242 = por %p240, %p241
      %p244 = scmp.ne.s32.totalorder %s229, %s243
      %p245 = scmp.eq.s32.totalorder %s25, 0
      %p246 = por %p244, %p245
      %s247 = ssub.s32 %s19, %s26
      %p248 = scmp.eq.s32.totalorder %s247, 0
      %s250 = sadd.s32 %s249, 1
      %s251 = scalar_select %p248, %s249, %s250
      %p254 = pneg %p248
      %p255 = scmp.eq.s32.totalorder %s19, 1
      %p256 = por %p254, %p255
      %p257 = scmp.ne.s32.totalorder %s249, %s252
      %p258 = scmp.eq.s32.totalorder %s19, 0
      %p259 = por %p257, %p258
      %p260 = scmp.ne.s32.totalorder %s249, %s252
      %p261 = scmp.eq.s32.totalorder %s24, 1
      %p262 = por %p260, %p261
      %p263 = scmp.ne.s32.totalorder %s252, %s253
      %p264 = scmp.eq.s32.totalorder %s24, 0
      %p265 = por %p263, %p264
      %p266 = scmp.ne.s32.totalorder %s252, %s253
      %p267 = scmp.eq.s32.totalorder %s25, 1
      %p268 = por %p266, %p267
      %p270 = scmp.ne.s32.totalorder %s253, %s269
      %p271 = scmp.eq.s32.totalorder %s25, 0
      %p272 = por %p270, %p271
      %p273 = scmp.le.s32.totalorder 1, %s19
      %p274 = scmp.lt.s32.totalorder %s19, 3
      %p275 = pnand %p273, %p274
      %p276 = pneg %p275
      // Predicated region
      $region9: #{tpu_custom_call.1} parent=5 // pred_check
        _
      $region10: #{tpu_custom_call.1} parent=5 // pred_check_branch
        %278 = sbr.rel (%p275) target = $region12
      $region11: #{tpu_custom_call.1} parent=5 // pred_region
        %s279 = ssub.s32 %s19, 1
        // Predicated region
        $region13: #{tpu_custom_call.1} parent=11 // pred_check
          %p280 = pneg %p92
        $region14: #{tpu_custom_call.1} parent=11 // pred_check_branch
          %282 = sbr.rel (%p280) target = $region16
        $region15: #{tpu_custom_call.1} parent=11 // pred_region
          _
        $region16: #{tpu_custom_call.1} parent=11 // pred_fallthru
          _
        // Predicated region
        $region17: #{tpu_custom_call.1} parent=11 // pred_check
          %p283 = pneg %p113
        $region18: #{tpu_custom_call.1} parent=11 // pred_check_branch
          %285 = sbr.rel (%p283) target = $region20
        $region19: #{tpu_custom_call.1} parent=11 // pred_region
          _
        $region20: #{tpu_custom_call.1} parent=11 // pred_fallthru
          _
        // Predicated region
        $region21: #{tpu_custom_call.1} parent=11 // pred_check
          %p286 = pneg %p134
        $region22: #{tpu_custom_call.1} parent=11 // pred_check_branch
          %288 = sbr.rel (%p286) target = $region24
        $region23: #{tpu_custom_call.1} parent=11 // pred_region
          _
        $region24: #{tpu_custom_call.1} parent=11 // pred_fallthru
          _
        // Predicated region
        $region25: #{tpu_custom_call.1} parent=11 // pred_check
          %p289 = pneg %p155
        $region26: #{tpu_custom_call.1} parent=11 // pred_check_branch
          %291 = sbr.rel (%p289) target = $region28
        $region27: #{tpu_custom_call.1} parent=11 // pred_region
          _
        $region28: #{tpu_custom_call.1} parent=11 // pred_fallthru
          _
        // Predicated region
        $region29: #{tpu_custom_call.1} parent=11 // pred_check
          %p292 = pneg %p176
        $region30: #{tpu_custom_call.1} parent=11 // pred_check_branch
          %294 = sbr.rel (%p292) target = $region32
        $region31: #{tpu_custom_call.1} parent=11 // pred_region
          _
        $region32: #{tpu_custom_call.1} parent=11 // pred_fallthru
          _
        // Predicated region
        $region33: #{tpu_custom_call.1} parent=11 // pred_check
          %p295 = pneg %p197
        $region34: #{tpu_custom_call.1} parent=11 // pred_check_branch
          %297 = sbr.rel (%p295) target = $region36
        $region35: #{tpu_custom_call.1} parent=11 // pred_region
          _
        $region36: #{tpu_custom_call.1} parent=11 // pred_fallthru
          _
        // Predicated region
        $region37: #{tpu_custom_call.1} parent=11 // pred_check
          %p298 = pneg %p218
        $region38: #{tpu_custom_call.1} parent=11 // pred_check_branch
          %300 = sbr.rel (%p298) target = $region40
        $region39: #{tpu_custom_call.1} parent=11 // pred_region
          _
        $region40: #{tpu_custom_call.1} parent=11 // pred_fallthru
          _
        // Predicated region
        $region41: #{tpu_custom_call.1} parent=11 // pred_check
          %p301 = pneg %p239
        $region42: #{tpu_custom_call.1} parent=11 // pred_check_branch
          %303 = sbr.rel (%p301) target = $region44
        $region43: #{tpu_custom_call.1} parent=11 // pred_region
          _
        $region44: #{tpu_custom_call.1} parent=11 // pred_fallthru
          _
      $region12: #{tpu_custom_call.1} parent=5 // pred_fallthru
        _
      %p304 = scmp.lt.s32.totalorder %s19, 2
      // Predicated region
      $region45: #{tpu_custom_call.1} parent=5 // pred_check
        %p305 = pneg %p304
      $region46: #{tpu_custom_call.1} parent=5 // pred_check_branch
        %307 = sbr.rel (%p305) target = $region48
      $region47: #{tpu_custom_call.1} parent=5 // pred_region
        // Predicated region
        $region49: #{tpu_custom_call.1} parent=47 // pred_check
          %p308 = pneg %p39
        $region50: #{tpu_custom_call.1} parent=47 // pred_check_branch
          %310 = sbr.rel (%p308) target = $region52
        $region51: #{tpu_custom_call.1} parent=47 // pred_region
          %p311 = scmp.lt.s32.totalorder %s19, 1
          %s312 = scalar_select %p311, %s19, 1
          %s313 = smul.addr %s312, 2
          %s314 = smul.addr %s313, 4
          %s315 = scalar_lea.vmem %s0, %s314
        $region52: #{tpu_custom_call.1} parent=47 // pred_fallthru
          _
        // Predicated region
        $region53: #{tpu_custom_call.1} parent=47 // pred_check
          %p316 = pneg %p65
        $region54: #{tpu_custom_call.1} parent=47 // pred_check_branch
          %318 = sbr.rel (%p316) target = $region56
        $region55: #{tpu_custom_call.1} parent=47 // pred_region
          %p319 = scmp.lt.s32.totalorder %s19, 1
          %s320 = scalar_select %p319, %s19, 1
          %s321 = smul.addr %s320, 4
          %s322 = smul.addr %s321, 4
          %s323 = scalar_lea.vmem %s1, %s322
        $region56: #{tpu_custom_call.1} parent=47 // pred_fallthru
          _
      $region48: #{tpu_custom_call.1} parent=5 // pred_fallthru
        _
      %p324 = scmp.le.s32.totalorder 1, %s19
      %p325 = scmp.lt.s32.totalorder %s19, 3
      %p326 = pnand %p324, %p325
      %p327 = pneg %p326
      // Predicated region
      $region57: #{tpu_custom_call.1} parent=5 // pred_check
        _
      $region58: #{tpu_custom_call.1} parent=5 // pred_check_branch
        %329 = sbr.rel (%p326) target = $region60
      $region59: #{tpu_custom_call.1} parent=5 // pred_region
        %s330 = ssub.s32 %s19, 1
        %p331 = scmp.lt.s32.totalorder %s24, 1
        %s332 = scalar_select %p331, %s24, 1
        %s333 = smul.addr %s332, 2
        %s334 = smul.addr %s333, 4
        %s335 = scalar_lea.vmem %s0, %s334
        %p336 = pneg %p45
        %p337 = pneg %p42
        %p338 = scmp.lt.s32.totalorder %s24, 1
        %s339 = scalar_select %p338, %s24, 1
        %s340 = smul.addr %s339, 4
        %s341 = smul.addr %s340, 4
        %s342 = scalar_lea.vmem %s1, %s341
        %p343 = pneg %p71
        %p344 = pneg %p68
        %p345 = pneg %p92
        %p346 = pneg %p89
        %p347 = pneg %p113
        %p348 = pneg %p110
        %p349 = pneg %p134
        %p350 = pneg %p131
        %p351 = pneg %p155
        %p352 = pneg %p152
        %p353 = pneg %p176
        %p354 = pneg %p173
        %p355 = pneg %p197
        %p356 = pneg %p194
        %p357 = pneg %p218
        %p358 = pneg %p215
        %p359 = pneg %p239
        %p360 = pneg %p236
        %p361 = pneg %p265
        %p362 = pneg %p262
        %s363 = sand.u32 %s252, 1
        %s364 = scalar_lea.sflag [#allocation3], %s363
        %s365 = sand.u32 %s252, 1
        %s366 = smul.addr %s365, 16
        %s367 = scalar_lea.vmem [#allocation2], %s366
        %p368 = scmp.lt.s32.totalorder %s24, 1
        %s369 = scalar_select %p368, %s24, 1
        %s370 = smul.addr %s369, 2
        %s371 = smul.addr %s370, 4
        %s372 = scalar_lea.vmem %s0, %s371
        %p373 = scmp.lt.s32.totalorder %s24, 1
        %s374 = scalar_select %p373, %s24, 1
        %s375 = smul.addr %s374, 4
        %s376 = smul.addr %s375, 4
        %s377 = scalar_lea.vmem %s1, %s376
        %v379 = vld [vmem:[%s372] sm:$0xf]
        %v380 = vld [vmem:[%s372 + $0x4] sm:$0xf]
        %v381 = vld [vmem:[%s3] sm:$0xf]
        %v382 = vld [vmem:[%s3 + $0x4] sm:$0xf]
        %v383 = vld [vmem:[%s3 + $0x8] sm:$0xf]
        %v384 = vld [vmem:[%s3 + $0xc] sm:$0xf]
        %v387 = vunpack.c.l.b16 %v379
        %v388 = vunpack.c.l.b16 %v380
        %v389 = vpack.c.b16 %v388, %v387
        %v394 = vunpack.c.l.b16 %v381
        %v395 = vunpack.c.l.b16 %v382
        %v396 = vunpack.c.l.b16 %v383
        %v397 = vunpack.c.l.b16 %v384
        %v398 = vpack.c.b16 %v395, %v394
        %v399 = vpack.c.b16 %v397, %v396
        %vm402 = vcmask 261120
        %v404 = vsel %vm402, %v389, 0
        %406 = vmatprep.subr.bf16.mxu0 0
        %407 = vmatpush1.bf16.msra.mxu0 %v398
        %408 = vmatprep.subr.bf16.mxu0 0
        %409 = vmatpush1.bf16.msra.mxu0 %v399
        %410 = vmatprep.subr.bf16.mxu0 0
        %411 = vmatpush1.bf16.msra.mxu0 0
        %412 = vmatprep.subr.bf16.mxu0 0
        %413 = vmatpush1.bf16.msra.mxu0 0
        %414 = vmatprep.subr.bf16.mxu0 0
        %415 = vmatpush1.bf16.msra.mxu0 0
        %416 = vmatprep.subr.bf16.mxu0 0
        %417 = vmatpush1.bf16.msra.mxu0 0
        %418 = vmatprep.subr.bf16.mxu0 0
        %419 = vmatpush1.bf16.msra.mxu0 0
        %420 = vmatprep.subr.bf16.mxu0 0
        %421 = vmatpush1.bf16.msra.mxu0 0
        %422 = vmatprep.subr.bf16.mxu0 0
        %423 = vmatpush1.bf16.msra.mxu0 0
        %424 = vmatprep.subr.bf16.mxu0 0
        %425 = vmatpush1.bf16.msra.mxu0 0
        %426 = vmatprep.subr.bf16.mxu0 0
        %427 = vmatpush1.bf16.msra.mxu0 0
        %428 = vmatprep.subr.bf16.mxu0 0
        %429 = vmatpush1.bf16.msra.mxu0 0
        %430 = vmatprep.subr.bf16.mxu0 0
        %431 = vmatpush1.bf16.msra.mxu0 0
        %432 = vmatprep.subr.bf16.mxu0 0
        %433 = vmatpush1.bf16.msra.mxu0 0
        %434 = vmatprep.subr.bf16.mxu0 0
        %435 = vmatpush1.bf16.msra.mxu0 0
        %436 = vmatprep.subr.bf16.mxu0 0
        %437 = vmatpush1.bf16.msra.mxu0 0
        %438 = vmatprep.mubr.bf16.mxu0 0
        %439 = vmatmul.mubr.bf16.gmra.mrb[0].mxu0 %v404
        %v440 = vpop.f32.mrb[0].mxu0
        %v441 = vadd.f32 0.0, %v440
        %v442 = vpop.f32.mrb[0].mxu0
        %v443 = vpop.f32.mrb[0].mxu0
        %v444 = vadd.f32 0.0, %v443
        %v445 = vpop.f32.mrb[0].mxu0
        %446 = vdwg.mxu0
        %v447 = vld [vmem:[%s2] sm:$0xf]
        %v448 = vld [vmem:[%s2 + $0x4] sm:$0xf]
        %v449 = vld [vmem:[%s2 + $0x8] sm:$0xf]
        %v450 = vld [vmem:[%s2 + $0xc] sm:$0xf]
        %v451 = vpack.c.bf16 %v444, %v441
        %v456 = vunpack.c.l.b16 %v447
        %v457 = vunpack.c.l.b16 %v448
        %v458 = vunpack.c.l.b16 %v449
        %v459 = vunpack.c.l.b16 %v450
        %v460 = vpack.c.b16 %v457, %v456
        %v461 = vpack.c.b16 %v459, %v458
        %vm462 = vcmask 130048
        %v464 = vsel %vm462, %v460, 0
        %v467 = vsel %vm462, %v461, 0
        %469 = vmatprep.subr.bf16.mxu0 0
        %470 = vmatpush1.bf16.msra.mxu0 %v451
        %471 = vmatprep.subr.bf16.mxu0 0
        %472 = vmatpush1.bf16.msra.mxu0 0
        %473 = vmatprep.subr.bf16.mxu0 0
        %474 = vmatpush1.bf16.msra.mxu0 0
        %475 = vmatprep.subr.bf16.mxu0 0
        %476 = vmatpush1.bf16.msra.mxu0 0
        %477 = vmatprep.subr.bf16.mxu0 0
        %478 = vmatpush1.bf16.msra.mxu0 0
        %479 = vmatprep.subr.bf16.mxu0 0
        %480 = vmatpush1.bf16.msra.mxu0 0
        %481 = vmatprep.subr.bf16.mxu0 0
        %482 = vmatpush1.bf16.msra.mxu0 0
        %483 = vmatprep.subr.bf16.mxu0 0
        %484 = vmatpush1.bf16.msra.mxu0 0
        %485 = vmatprep.subr.bf16.mxu0 0
        %486 = vmatpush1.bf16.msra.mxu0 0
        %487 = vmatprep.subr.bf16.mxu0 0
        %488 = vmatpush1.bf16.msra.mxu0 0
        %489 = vmatprep.subr.bf16.mxu0 0
        %490 = vmatpush1.bf16.msra.mxu0 0
        %491 = vmatprep.subr.bf16.mxu0 0
        %492 = vmatpush1.bf16.msra.mxu0 0
        %493 = vmatprep.subr.bf16.mxu0 0
        %494 = vmatpush1.bf16.msra.mxu0 0
        %495 = vmatprep.subr.bf16.mxu0 0
        %496 = vmatpush1.bf16.msra.mxu0 0
        %497 = vmatprep.subr.bf16.mxu0 0
        %498 = vmatpush1.bf16.msra.mxu0 0
        %499 = vmatprep.subr.bf16.mxu0 0
        %500 = vmatpush1.bf16.msra.mxu0 0
        %501 = vmatprep.mubr.bf16.mxu0 0
        %502 = vmatmul.mubr.bf16.gmra.mrb[0].mxu0 %v464
        %v503 = vpop.f32.mrb[0].mxu0
        %v504 = vadd.f32 0.0, %v503
        %v505 = vpop.f32.mrb[0].mxu0
        %v506 = vpop.f32.mrb[0].mxu0
        %v507 = vadd.f32 0.0, %v506
        %v508 = vpop.f32.mrb[0].mxu0
        %509 = vmatprep.mubr.bf16.mxu0 0
        %510 = vmatmul.mubr.bf16.gmra.mrb[0].mxu0 %v467
        %v511 = vpop.f32.mrb[0].mxu0
        %v512 = vadd.f32 0.0, %v511
        %v513 = vpop.f32.mrb[0].mxu0
        %v514 = vpop.f32.mrb[0].mxu0
        %v515 = vadd.f32 0.0, %v514
        %v516 = vpop.f32.mrb[0].mxu0
        %517 = vdwg.mxu0
        %v518 = vld [vmem:[%s377] sm:$0xf]
        %v519 = vld [vmem:[%s377 + $0x4] sm:$0xf]
        %v520 = vld [vmem:[%s377 + $0x8] sm:$0xf]
        %v521 = vld [vmem:[%s377 + $0xc] sm:$0xf]
        %v522 = vpack.c.bf16 %v507, %v504
        %v523 = vpack.c.bf16 %v515, %v512
        %v528 = vunpack.c.l.b16 %v518
        %v529 = vunpack.c.l.b16 %v519
        %v530 = vunpack.c.l.b16 %v520
        %v531 = vunpack.c.l.b16 %v521
        %v532 = vpack.c.b16 %v529, %v528
        %v533 = vpack.c.b16 %v531, %v530
        %536 = vrot.lane.b32.xlu0 %v522, 64
        %v537 = vpop.permute.xlu0 %536
        %538 = vrot.lane.b32.xlu0 %v523, 64
        %v539 = vpop.permute.xlu0 %538
        %vm540 = vcmask 523264
        %v543 = vsel %vm540, %v532, %v537
        %v547 = vsel %vm540, %v533, %v539
        %v549 = vld [vmem:[%s4] sm:$0xf]
        %v550 = vld [vmem:[%s4 + $0x4] sm:$0xf]
        %v551 = vld [vmem:[%s4 + $0x8] sm:$0xf]
        %v552 = vld [vmem:[%s4 + $0xc] sm:$0xf]
        %v553 = vld [vmem:[%s5] sm:$0xf]
        %v554 = vld [vmem:[%s5 + $0x4] sm:$0xf]
        %v555 = vld [vmem:[%s5 + $0x8] sm:$0xf]
        %v556 = vld [vmem:[%s5 + $0xc] sm:$0xf]
        %v557 = vld [vmem:[%s8] sm:$0x1]
        %v562 = vunpack.c.l.b16 %v549
        %v563 = vunpack.c.l.b16 %v550
        %v564 = vunpack.c.l.b16 %v551
        %v565 = vunpack.c.l.b16 %v552
        %v566 = vpack.c.b16 %v563, %v562
        %v567 = vpack.c.b16 %v565, %v564
        %v569 = vsel %vm402, %v566, 0
        %v572 = vsel %vm402, %v567, 0
        %574 = vmatprep.subr.bf16.mxu0 0
        %575 = vmatpush1.bf16.msra.mxu0 %v543
        %576 = vmatprep.subr.bf16.mxu0 0
        %577 = vmatpush1.bf16.msra.mxu0 %v547
        %578 = vmatprep.subr.bf16.mxu0 0
        %579 = vmatpush1.bf16.msra.mxu0 0
        %580 = vmatprep.subr.bf16.mxu0 0
        %581 = vmatpush1.bf16.msra.mxu0 0
        %582 = vmatprep.subr.bf16.mxu0 0
        %583 = vmatpush1.bf16.msra.mxu0 0
        %584 = vmatprep.subr.bf16.mxu0 0
        %585 = vmatpush1.bf16.msra.mxu0 0
        %586 = vmatprep.subr.bf16.mxu0 0
        %587 = vmatpush1.bf16.msra.mxu0 0
        %588 = vmatprep.subr.bf16.mxu0 0
        %589 = vmatpush1.bf16.msra.mxu0 0
        %590 = vmatprep.subr.bf16.mxu0 0
        %591 = vmatpush1.bf16.msra.mxu0 0
        %592 = vmatprep.subr.bf16.mxu0 0
        %593 = vmatpush1.bf16.msra.mxu0 0
        %594 = vmatprep.subr.bf16.mxu0 0
        %595 = vmatpush1.bf16.msra.mxu0 0
        %596 = vmatprep.subr.bf16.mxu0 0
        %597 = vmatpush1.bf16.msra.mxu0 0
        %598 = vmatprep.subr.bf16.mxu0 0
        %599 = vmatpush1.bf16.msra.mxu0 0
        %600 = vmatprep.subr.bf16.mxu0 0
        %601 = vmatpush1.bf16.msra.mxu0 0
        %602 = vmatprep.subr.bf16.mxu0 0
        %603 = vmatpush1.bf16.msra.mxu0 0
        %604 = vmatprep.subr.bf16.mxu0 0
        %605 = vmatpush1.bf16.msra.mxu0 0
        %606 = vmatprep.mubr.bf16.mxu0 0
        %607 = vmatmul.mubr.bf16.gmra.mrb[0].mxu0 %v569
        %v608 = vpop.f32.mrb[0].mxu0
        %v609 = vadd.f32 0.0, %v608
        %v610 = vpop.f32.mrb[0].mxu0
        %v611 = vpop.f32.mrb[0].mxu0
        %v612 = vadd.f32 0.0, %v611
        %v613 = vpop.f32.mrb[0].mxu0
        %614 = vmatprep.mubr.bf16.mxu0 0
        %615 = vmatmul.mubr.bf16.gmra.mrb[0].mxu0 %v572
        %v616 = vpop.f32.mrb[0].mxu0
        %v617 = vadd.f32 0.0, %v616
        %v618 = vpop.f32.mrb[0].mxu0
        %v619 = vpop.f32.mrb[0].mxu0
        %v620 = vadd.f32 0.0, %v619
        %v621 = vpop.f32.mrb[0].mxu0
        %622 = vdwg.mxu0
        %v623 = vpack.c.bf16 %v612, %v609
        %v624 = vpack.c.bf16 %v620, %v617
        %v629 = vunpack.c.l.b16 %v553
        %v630 = vunpack.c.l.b16 %v554
        %v631 = vunpack.c.l.b16 %v555
        %v632 = vunpack.c.l.b16 %v556
        %v633 = vpack.c.b16 %v630, %v629
        %v634 = vpack.c.b16 %v632, %v631
        %v636 = vsel %vm402, %v633, 0
        %v639 = vsel %vm402, %v634, 0
        %641 = vmatprep.subr.bf16.mxu0 0
        %642 = vmatpush1.bf16.msra.mxu0 %v543
        %643 = vmatprep.subr.bf16.mxu0 0
        %644 = vmatpush1.bf16.msra.mxu0 %v547
        %645 = vmatprep.subr.bf16.mxu0 0
        %646 = vmatpush1.bf16.msra.mxu0 0
        %647 = vmatprep.subr.bf16.mxu0 0
        %648 = vmatpush1.bf16.msra.mxu0 0
        %649 = vmatprep.subr.bf16.mxu0 0
        %650 = vmatpush1.bf16.msra.mxu0 0
        %651 = vmatprep.subr.bf16.mxu0 0
        %652 = vmatpush1.bf16.msra.mxu0 0
        %653 = vmatprep.subr.bf16.mxu0 0
        %654 = vmatpush1.bf16.msra.mxu0 0
        %655 = vmatprep.subr.bf16.mxu0 0
        %656 = vmatpush1.bf16.msra.mxu0 0
        %657 = vmatprep.subr.bf16.mxu0 0
        %658 = vmatpush1.bf16.msra.mxu0 0
        %659 = vmatprep.subr.bf16.mxu0 0
        %660 = vmatpush1.bf16.msra.mxu0 0
        %661 = vmatprep.subr.bf16.mxu0 0
        %662 = vmatpush1.bf16.msra.mxu0 0
        %663 = vmatprep.subr.bf16.mxu0 0
        %664 = vmatpush1.bf16.msra.mxu0 0
        %665 = vmatprep.subr.bf16.mxu0 0
        %666 = vmatpush1.bf16.msra.mxu0 0
        %667 = vmatprep.subr.bf16.mxu0 0
        %668 = vmatpush1.bf16.msra.mxu0 0
        %669 = vmatprep.subr.bf16.mxu0 0
        %670 = vmatpush1.bf16.msra.mxu0 0
        %671 = vmatprep.subr.bf16.mxu0 0
        %672 = vmatpush1.bf16.msra.mxu0 0
        %673 = vmatprep.mubr.bf16.mxu0 0
        %674 = vmatmul.mubr.bf16.gmra.mrb[0].mxu0 %v636
        %v675 = vpop.f32.mrb[0].mxu0
        %v676 = vadd.f32 0.0, %v675
        %v677 = vpop.f32.mrb[0].mxu0
        %v678 = vpop.f32.mrb[0].mxu0
        %v679 = vadd.f32 0.0, %v678
        %v680 = vpop.f32.mrb[0].mxu0
        %681 = vmatprep.mubr.bf16.mxu0 0
        %682 = vmatmul.mubr.bf16.gmra.mrb[0].mxu0 %v639
        %v683 = vpop.f32.mrb[0].mxu0
        %v684 = vadd.f32 0.0, %v683
        %v685 = vpop.f32.mrb[0].mxu0
        %v686 = vpop.f32.mrb[0].mxu0
        %v687 = vadd.f32 0.0, %v686
        %v688 = vpop.f32.mrb[0].mxu0
        %689 = vdwg.mxu0
        %v690 = vpack.c.bf16 %v679, %v676
        %v691 = vpack.c.bf16 %v687, %v684
        %v692 = vld [vmem:[%s6] sm:$0xf]
        %v693 = vld [vmem:[%s6 + $0x4] sm:$0xf]
        %v694 = vld [vmem:[%s6 + $0x8] sm:$0xf]
        %v695 = vld [vmem:[%s6 + $0xc] sm:$0xf]
        %v696 = vld [vmem:[%s6 + $0x10] sm:$0xf]
        %v697 = vld [vmem:[%s6 + $0x14] sm:$0xf]
        %v698 = vld [vmem:[%s6 + $0x18] sm:$0xf]
        %v699 = vld [vmem:[%s6 + $0x1c] sm:$0xf]
        %v700 = vld [vmem:[%s6 + $0x20] sm:$0xf]
        %v701 = vld [vmem:[%s6 + $0x24] sm:$0xf]
        %v702 = vld [vmem:[%s6 + $0x28] sm:$0xf]
        %v703 = vld [vmem:[%s6 + $0x2c] sm:$0xf]
        %v704 = vld [vmem:[%s6 + $0x30] sm:$0xf]
        %v705 = vld [vmem:[%s6 + $0x34] sm:$0xf]
        %v706 = vld [vmem:[%s6 + $0x38] sm:$0xf]
        %v707 = vld [vmem:[%s6 + $0x3c] sm:$0xf]
        %s708 = scalar_lea.vmem %s6, 64
        %v709 = vld [vmem:[%s708] sm:$0xf]
        %v710 = vld [vmem:[%s708 + $0x4] sm:$0xf]
        %v711 = vld [vmem:[%s708 + $0x8] sm:$0xf]
        %v712 = vld [vmem:[%s708 + $0xc] sm:$0xf]
        %v713 = vld [vmem:[%s708 + $0x10] sm:$0xf]
        %v714 = vld [vmem:[%s708 + $0x14] sm:$0xf]
        %v715 = vld [vmem:[%s708 + $0x18] sm:$0xf]
        %v716 = vld [vmem:[%s708 + $0x1c] sm:$0xf]
        %v717 = vld [vmem:[%s708 + $0x20] sm:$0xf]
        %v718 = vld [vmem:[%s708 + $0x24] sm:$0xf]
        %v719 = vld [vmem:[%s708 + $0x28] sm:$0xf]
        %v720 = vld [vmem:[%s708 + $0x2c] sm:$0xf]
        %v721 = vld [vmem:[%s708 + $0x30] sm:$0xf]
        %v722 = vld [vmem:[%s708 + $0x34] sm:$0xf]
        %v723 = vld [vmem:[%s708 + $0x38] sm:$0xf]
        %v724 = vld [vmem:[%s708 + $0x3c] sm:$0xf]
        %v741 = vunpack.c.l.b16 %v709
        %v742 = vunpack.c.l.b16 %v710
        %v743 = vunpack.c.l.b16 %v711
        %v744 = vunpack.c.l.b16 %v712
        %v745 = vunpack.c.l.b16 %v713
        %v746 = vunpack.c.l.b16 %v714
        %v747 = vunpack.c.l.b16 %v715
        %v748 = vunpack.c.l.b16 %v716
        %v749 = vunpack.c.l.b16 %v717
        %v750 = vunpack.c.l.b16 %v718
        %v751 = vunpack.c.l.b16 %v719
        %v752 = vunpack.c.l.b16 %v720
        %v753 = vunpack.c.l.b16 %v721
        %v754 = vunpack.c.l.b16 %v722
        %v755 = vunpack.c.l.b16 %v723
        %v756 = vunpack.c.l.b16 %v724
        %v757 = vpack.c.b16 %v742, %v741
        %v758 = vpack.c.b16 %v744, %v743
        %v759 = vpack.c.b16 %v746, %v745
        %v760 = vpack.c.b16 %v748, %v747
        %v761 = vpack.c.b16 %v750, %v749
        %v762 = vpack.c.b16 %v752, %v751
        %v763 = vpack.c.b16 %v754, %v753
        %v764 = vpack.c.b16 %v756, %v755
        %773 = vmatprep.subr.bf16.mxu0 0
        %774 = vmatpush1.bf16.msra.mxu0 %v757
        %775 = vmatprep.subr.bf16.mxu0 0
        %776 = vmatpush1.bf16.msra.mxu0 %v758
        %777 = vmatprep.subr.bf16.mxu0 0
        %778 = vmatpush1.bf16.msra.mxu0 %v759
        %779 = vmatprep.subr.bf16.mxu0 0
        %780 = vmatpush1.bf16.msra.mxu0 %v760
        %781 = vmatprep.subr.bf16.mxu0 0
        %782 = vmatpush1.bf16.msra.mxu0 %v761
        %783 = vmatprep.subr.bf16.mxu0 0
        %784 = vmatpush1.bf16.msra.mxu0 %v762
        %785 = vmatprep.subr.bf16.mxu0 0
        %786 = vmatpush1.bf16.msra.mxu0 %v763
        %787 = vmatprep.subr.bf16.mxu0 0
        %788 = vmatpush1.bf16.msra.mxu0 %v764
        %789 = vmatprep.subr.bf16.mxu0 0
        %790 = vmatpush1.bf16.msra.mxu0 0
        %791 = vmatprep.subr.bf16.mxu0 0
        %792 = vmatpush1.bf16.msra.mxu0 0
        %793 = vmatprep.subr.bf16.mxu0 0
        %794 = vmatpush1.bf16.msra.mxu0 0
        %795 = vmatprep.subr.bf16.mxu0 0
        %796 = vmatpush1.bf16.msra.mxu0 0
        %797 = vmatprep.subr.bf16.mxu0 0
        %798 = vmatpush1.bf16.msra.mxu0 0
        %799 = vmatprep.subr.bf16.mxu0 0
        %800 = vmatpush1.bf16.msra.mxu0 0
        %801 = vmatprep.subr.bf16.mxu0 0
        %802 = vmatpush1.bf16.msra.mxu0 0
        %803 = vmatprep.subr.bf16.mxu0 0
        %804 = vmatpush1.bf16.msra.mxu0 0
        %805 = vmatprep.mubr.bf16.mxu0 0
        %806 = vmatmul.mubr.bf16.gmra.mrb[0].mxu0 %v543
        %v807 = vpop.f32.mrb[0].mxu0
        %v808 = vadd.f32 0.0, %v807
        %v809 = vpop.f32.mrb[0].mxu0
        %v810 = vpop.f32.mrb[0].mxu0
        %v811 = vadd.f32 0.0, %v810
        %v812 = vpop.f32.mrb[0].mxu0
        %813 = vmatprep.mubr.bf16.mxu0 0
        %814 = vmatmul.mubr.bf16.gmra.mrb[0].mxu0 %v547
        %v815 = vpop.f32.mrb[0].mxu0
        %v816 = vadd.f32 0.0, %v815
        %v817 = vpop.f32.mrb[0].mxu0
        %v818 = vpop.f32.mrb[0].mxu0
        %v819 = vadd.f32 0.0, %v818
        %v820 = vpop.f32.mrb[0].mxu0
        %821 = vdwg.mxu0
        %v838 = vunpack.c.l.b16 %v692
        %v839 = vunpack.c.l.b16 %v693
        %v840 = vunpack.c.l.b16 %v694
        %v841 = vunpack.c.l.b16 %v695
        %v842 = vunpack.c.l.b16 %v696
        %v843 = vunpack.c.l.b16 %v697
        %v844 = vunpack.c.l.b16 %v698
        %v845 = vunpack.c.l.b16 %v699
        %v846 = vunpack.c.l.b16 %v700
        %v847 = vunpack.c.l.b16 %v701
        %v848 = vunpack.c.l.b16 %v702
        %v849 = vunpack.c.l.b16 %v703
        %v850 = vunpack.c.l.b16 %v704
        %v851 = vunpack.c.l.b16 %v705
        %v852 = vunpack.c.l.b16 %v706
        %v853 = vunpack.c.l.b16 %v707
        %v854 = vpack.c.b16 %v839, %v838
        %v855 = vpack.c.b16 %v841, %v840
        %v856 = vpack.c.b16 %v843, %v842
        %v857 = vpack.c.b16 %v845, %v844
        %v858 = vpack.c.b16 %v847, %v846
        %v859 = vpack.c.b16 %v849, %v848
        %v860 = vpack.c.b16 %v851, %v850
        %v861 = vpack.c.b16 %v853, %v852
        %870 = vmatprep.subr.bf16.mxu0 0
        %871 = vmatpush1.bf16.msra.mxu0 %v854
        %872 = vmatprep.subr.bf16.mxu0 0
        %873 = vmatpush1.bf16.msra.mxu0 %v855
        %874 = vmatprep.subr.bf16.mxu0 0
        %875 = vmatpush1.bf16.msra.mxu0 %v856
        %876 = vmatprep.subr.bf16.mxu0 0
        %877 = vmatpush1.bf16.msra.mxu0 %v857
        %878 = vmatprep.subr.bf16.mxu0 0
        %879 = vmatpush1.bf16.msra.mxu0 %v858
        %880 = vmatprep.subr.bf16.mxu0 0
        %881 = vmatpush1.bf16.msra.mxu0 %v859
        %882 = vmatprep.subr.bf16.mxu0 0
        %883 = vmatpush1.bf16.msra.mxu0 %v860
        %884 = vmatprep.subr.bf16.mxu0 0
        %885 = vmatpush1.bf16.msra.mxu0 %v861
        %886 = vmatprep.subr.bf16.mxu0 0
        %887 = vmatpush1.bf16.msra.mxu0 0
        %888 = vmatprep.subr.bf16.mxu0 0
        %889 = vmatpush1.bf16.msra.mxu0 0
        %890 = vmatprep.subr.bf16.mxu0 0
        %891 = vmatpush1.bf16.msra.mxu0 0
        %892 = vmatprep.subr.bf16.mxu0 0
        %893 = vmatpush1.bf16.msra.mxu0 0
        %894 = vmatprep.subr.bf16.mxu0 0
        %895 = vmatpush1.bf16.msra.mxu0 0
        %896 = vmatprep.subr.bf16.mxu0 0
        %897 = vmatpush1.bf16.msra.mxu0 0
        %898 = vmatprep.subr.bf16.mxu0 0
        %899 = vmatpush1.bf16.msra.mxu0 0
        %900 = vmatprep.subr.bf16.mxu0 0
        %901 = vmatpush1.bf16.msra.mxu0 0
        %902 = vmatprep.mubr.bf16.mxu0 0
        %903 = vmatmul.mubr.bf16.gmra.mrb[0].mxu0 %v623
        %v904 = vpop.f32.mrb[0].mxu0
        %v905 = vadd.f32 %v808, %v904
        %v906 = vpop.f32.mrb[0].mxu0
        %v907 = vpop.f32.mrb[0].mxu0
        %v908 = vadd.f32 %v811, %v907
        %v909 = vpop.f32.mrb[0].mxu0
        %910 = vmatprep.mubr.bf16.mxu0 0
        %911 = vmatmul.mubr.bf16.gmra.mrb[0].mxu0 %v624
        %v912 = vpop.f32.mrb[0].mxu0
        %v913 = vadd.f32 %v816, %v912
        %v914 = vpop.f32.mrb[0].mxu0
        %v915 = vpop.f32.mrb[0].mxu0
        %v916 = vadd.f32 %v819, %v915
        %v917 = vpop.f32.mrb[0].mxu0
        %918 = vdwg.mxu0
        %s919 = scalar_lea.vmem %s6, 128
        %v920 = vld [vmem:[%s919] sm:$0xf]
        %v921 = vld [vmem:[%s919 + $0x4] sm:$0xf]
        %v922 = vld [vmem:[%s919 + $0x8] sm:$0xf]
        %v923 = vld [vmem:[%s919 + $0xc] sm:$0xf]
        %v924 = vld [vmem:[%s919 + $0x10] sm:$0xf]
        %v925 = vld [vmem:[%s919 + $0x14] sm:$0xf]
        %v926 = vld [vmem:[%s919 + $0x18] sm:$0xf]
        %v927 = vld [vmem:[%s919 + $0x1c] sm:$0xf]
        %v928 = vld [vmem:[%s919 + $0x20] sm:$0xf]
        %v929 = vld [vmem:[%s919 + $0x24] sm:$0xf]
        %v930 = vld [vmem:[%s919 + $0x28] sm:$0xf]
        %v931 = vld [vmem:[%s919 + $0x2c] sm:$0xf]
        %v932 = vld [vmem:[%s919 + $0x30] sm:$0xf]
        %v933 = vld [vmem:[%s919 + $0x34] sm:$0xf]
        %v934 = vld [vmem:[%s919 + $0x38] sm:$0xf]
        %v935 = vld [vmem:[%s919 + $0x3c] sm:$0xf]
        %v952 = vunpack.c.l.b16 %v920
        %v953 = vunpack.c.l.b16 %v921
        %v954 = vunpack.c.l.b16 %v922
        %v955 = vunpack.c.l.b16 %v923
        %v956 = vunpack.c.l.b16 %v924
        %v957 = vunpack.c.l.b16 %v925
        %v958 = vunpack.c.l.b16 %v926
        %v959 = vunpack.c.l.b16 %v927
        %v960 = vunpack.c.l.b16 %v928
        %v961 = vunpack.c.l.b16 %v929
        %v962 = vunpack.c.l.b16 %v930
        %v963 = vunpack.c.l.b16 %v931
        %v964 = vunpack.c.l.b16 %v932
        %v965 = vunpack.c.l.b16 %v933
        %v966 = vunpack.c.l.b16 %v934
        %v967 = vunpack.c.l.b16 %v935
        %v968 = vpack.c.b16 %v953, %v952
        %v969 = vpack.c.b16 %v955, %v954
        %v970 = vpack.c.b16 %v957, %v956
        %v971 = vpack.c.b16 %v959, %v958
        %v972 = vpack.c.b16 %v961, %v960
        %v973 = vpack.c.b16 %v963, %v962
        %v974 = vpack.c.b16 %v965, %v964
        %v975 = vpack.c.b16 %v967, %v966
        %984 = vmatprep.subr.bf16.mxu0 0
        %985 = vmatpush1.bf16.msra.mxu0 %v968
        %986 = vmatprep.subr.bf16.mxu0 0
        %987 = vmatpush1.bf16.msra.mxu0 %v969
        %988 = vmatprep.subr.bf16.mxu0 0
        %989 = vmatpush1.bf16.msra.mxu0 %v970
        %990 = vmatprep.subr.bf16.mxu0 0
        %991 = vmatpush1.bf16.msra.mxu0 %v971
        %992 = vmatprep.subr.bf16.mxu0 0
        %993 = vmatpush1.bf16.msra.mxu0 %v972
        %994 = vmatprep.subr.bf16.mxu0 0
        %995 = vmatpush1.bf16.msra.mxu0 %v973
        %996 = vmatprep.subr.bf16.mxu0 0
        %997 = vmatpush1.bf16.msra.mxu0 %v974
        %998 = vmatprep.subr.bf16.mxu0 0
        %999 = vmatpush1.bf16.msra.mxu0 %v975
        %1000 = vmatprep.subr.bf16.mxu0 0
        %1001 = vmatpush1.bf16.msra.mxu0 0
        %1002 = vmatprep.subr.bf16.mxu0 0
        %1003 = vmatpush1.bf16.msra.mxu0 0
        %1004 = vmatprep.subr.bf16.mxu0 0
        %1005 = vmatpush1.bf16.msra.mxu0 0
        %1006 = vmatprep.subr.bf16.mxu0 0
        %1007 = vmatpush1.bf16.msra.mxu0 0
        %1008 = vmatprep.subr.bf16.mxu0 0
        %1009 = vmatpush1.bf16.msra.mxu0 0
        %1010 = vmatprep.subr.bf16.mxu0 0
        %1011 = vmatpush1.bf16.msra.mxu0 0
        %1012 = vmatprep.subr.bf16.mxu0 0
        %1013 = vmatpush1.bf16.msra.mxu0 0
        %1014 = vmatprep.subr.bf16.mxu0 0
        %1015 = vmatpush1.bf16.msra.mxu0 0
        %1016 = vmatprep.mubr.bf16.mxu0 0
        %1017 = vmatmul.mubr.bf16.gmra.mrb[0].mxu0 %v690
        %v1018 = vpop.f32.mrb[0].mxu0
        %v1019 = vadd.f32 0.0, %v1018
        %v1020 = vpop.f32.mrb[0].mxu0
        %v1021 = vpop.f32.mrb[0].mxu0
        %v1022 = vadd.f32 0.0, %v1021
        %v1023 = vpop.f32.mrb[0].mxu0
        %1024 = vmatprep.mubr.bf16.mxu0 0
        %1025 = vmatmul.mubr.bf16.gmra.mrb[0].mxu0 %v691
        %v1026 = vpop.f32.mrb[0].mxu0
        %v1027 = vadd.f32 0.0, %v1026
        %v1028 = vpop.f32.mrb[0].mxu0
        %v1029 = vpop.f32.mrb[0].mxu0
        %v1030 = vadd.f32 0.0, %v1029
        %v1031 = vpop.f32.mrb[0].mxu0
        %1032 = vdwg.mxu0
        %v1033 = vadd.f32 %v905, %v1019
        %v1034 = vadd.f32 %v908, %v1022
        %v1035 = vadd.f32 %v913, %v1027
        %v1036 = vadd.f32 %v916, %v1030
        %v1038 = vlaneseq
        %v1039 = vshrl.u32 %v1038, 7
        %v1040 = vsub.s32 0, %v1039
        %v1041 = vrot.slane %v557, %v1040
        %v1043 = vadd.f32 %v1033, %v1041
        %v1044 = vadd.f32 %v1034, %v1041
        %v1045 = vadd.f32 %v1035, %v1041
        %v1046 = vadd.f32 %v1036, %v1041
        %v1047 = vmax.f32 %v1043, 0.0
        %v1048 = vmax.f32 %v1044, 0.0
        %v1049 = vmax.f32 %v1045, 0.0
        %v1050 = vmax.f32 %v1046, 0.0
        %v1051 = vpack.c.bf16 %v1048, %v1047
        %v1052 = vpack.c.bf16 %v1050, %v1049
        %v1053 = vld [vmem:[%s9] sm:$0x1]
        %1054 = vmatprep.subr.bf16.mxu0 0
        %1055 = vmatpush1.bf16.msra.mxu0 %v1051
        %1056 = vmatprep.subr.bf16.mxu0 0
        %1057 = vmatpush1.bf16.msra.mxu0 %v1052
        %1058 = vmatprep.subr.bf16.mxu0 0
        %1059 = vmatpush1.bf16.msra.mxu0 0
        %1060 = vmatprep.subr.bf16.mxu0 0
        %1061 = vmatpush1.bf16.msra.mxu0 0
        %1062 = vmatprep.subr.bf16.mxu0 0
        %1063 = vmatpush1.bf16.msra.mxu0 0
        %1064 = vmatprep.subr.bf16.mxu0 0
        %1065 = vmatpush1.bf16.msra.mxu0 0
        %1066 = vmatprep.subr.bf16.mxu0 0
        %1067 = vmatpush1.bf16.msra.mxu0 0
        %1068 = vmatprep.subr.bf16.mxu0 0
        %1069 = vmatpush1.bf16.msra.mxu0 0
        %1070 = vmatprep.subr.bf16.mxu0 0
        %1071 = vmatpush1.bf16.msra.mxu0 0
        %1072 = vmatprep.subr.bf16.mxu0 0
        %1073 = vmatpush1.bf16.msra.mxu0 0
        %1074 = vmatprep.subr.bf16.mxu0 0
        %1075 = vmatpush1.bf16.msra.mxu0 0
        %1076 = vmatprep.subr.bf16.mxu0 0
        %1077 = vmatpush1.bf16.msra.mxu0 0
        %1078 = vmatprep.subr.bf16.mxu0 0
        %1079 = vmatpush1.bf16.msra.mxu0 0
        %1080 = vmatprep.subr.bf16.mxu0 0
        %1081 = vmatpush1.bf16.msra.mxu0 0
        %1082 = vmatprep.subr.bf16.mxu0 0
        %1083 = vmatpush1.bf16.msra.mxu0 0
        %1084 = vmatprep.subr.bf16.mxu0 0
        %1085 = vmatpush1.bf16.msra.mxu0 0
        %1086 = vmatprep.mubr.bf16.mxu0 0
        %1087 = vmatmul.mubr.bf16.gmra.mrb[0].mxu0 %v569
        %v1088 = vpop.f32.mrb[0].mxu0
        %v1089 = vadd.f32 0.0, %v1088
        %v1090 = vpop.f32.mrb[0].mxu0
        %v1091 = vpop.f32.mrb[0].mxu0
        %v1092 = vadd.f32 0.0, %v1091
        %v1093 = vpop.f32.mrb[0].mxu0
        %1094 = vmatprep.mubr.bf16.mxu0 0
        %1095 = vmatmul.mubr.bf16.gmra.mrb[0].mxu0 %v572
        %v1096 = vpop.f32.mrb[0].mxu0
        %v1097 = vadd.f32 0.0, %v1096
        %v1098 = vpop.f32.mrb[0].mxu0
        %v1099 = vpop.f32.mrb[0].mxu0
        %v1100 = vadd.f32 0.0, %v1099
        %v1101 = vpop.f32.mrb[0].mxu0
        %1102 = vdwg.mxu0
        %v1103 = vpack.c.bf16 %v1092, %v1089
        %v1104 = vpack.c.bf16 %v1100, %v1097
        %1105 = vmatprep.subr.bf16.mxu0 0
        %1106 = vmatpush1.bf16.msra.mxu0 %v1051
        %1107 = vmatprep.subr.bf16.mxu0 0
        %1108 = vmatpush1.bf16.msra.mxu0 %v1052
        %1109 = vmatprep.subr.bf16.mxu0 0
        %1110 = vmatpush1.bf16.msra.mxu0 0
        %1111 = vmatprep.subr.bf16.mxu0 0
        %1112 = vmatpush1.bf16.msra.mxu0 0
        %1113 = vmatprep.subr.bf16.mxu0 0
        %1114 = vmatpush1.bf16.msra.mxu0 0
        %1115 = vmatprep.subr.bf16.mxu0 0
        %1116 = vmatpush1.bf16.msra.mxu0 0
        %1117 = vmatprep.subr.bf16.mxu0 0
        %1118 = vmatpush1.bf16.msra.mxu0 0
        %1119 = vmatprep.subr.bf16.mxu0 0
        %1120 = vmatpush1.bf16.msra.mxu0 0
        %1121 = vmatprep.subr.bf16.mxu0 0
        %1122 = vmatpush1.bf16.msra.mxu0 0
        %1123 = vmatprep.subr.bf16.mxu0 0
        %1124 = vmatpush1.bf16.msra.mxu0 0
        %1125 = vmatprep.subr.bf16.mxu0 0
        %1126 = vmatpush1.bf16.msra.mxu0 0
        %1127 = vmatprep.subr.bf16.mxu0 0
        %1128 = vmatpush1.bf16.msra.mxu0 0
        %1129 = vmatprep.subr.bf16.mxu0 0
        %1130 = vmatpush1.bf16.msra.mxu0 0
        %1131 = vmatprep.subr.bf16.mxu0 0
        %1132 = vmatpush1.bf16.msra.mxu0 0
        %1133 = vmatprep.subr.bf16.mxu0 0
        %1134 = vmatpush1.bf16.msra.mxu0 0
        %1135 = vmatprep.subr.bf16.mxu0 0
        %1136 = vmatpush1.bf16.msra.mxu0 0
        %1137 = vmatprep.mubr.bf16.mxu0 0
        %1138 = vmatmul.mubr.bf16.gmra.mrb[0].mxu0 %v636
        %v1139 = vpop.f32.mrb[0].mxu0
        %v1140 = vadd.f32 0.0, %v1139
        %v1141 = vpop.f32.mrb[0].mxu0
        %v1142 = vpop.f32.mrb[0].mxu0
        %v1143 = vadd.f32 0.0, %v1142
        %v1144 = vpop.f32.mrb[0].mxu0
        %1145 = vmatprep.mubr.bf16.mxu0 0
        %1146 = vmatmul.mubr.bf16.gmra.mrb[0].mxu0 %v639
        %v1147 = vpop.f32.mrb[0].mxu0
        %v1148 = vadd.f32 0.0, %v1147
        %v1149 = vpop.f32.mrb[0].mxu0
        %v1150 = vpop.f32.mrb[0].mxu0
        %v1151 = vadd.f32 0.0, %v1150
        %v1152 = vpop.f32.mrb[0].mxu0
        %1153 = vdwg.mxu0
        %v1154 = vpack.c.bf16 %v1143, %v1140
        %v1155 = vpack.c.bf16 %v1151, %v1148
        %v1156 = vld [vmem:[%s7] sm:$0xf]
        %v1157 = vld [vmem:[%s7 + $0x4] sm:$0xf]
        %v1158 = vld [vmem:[%s7 + $0x8] sm:$0xf]
        %v1159 = vld [vmem:[%s7 + $0xc] sm:$0xf]
        %v1160 = vld [vmem:[%s7 + $0x10] sm:$0xf]
        %v1161 = vld [vmem:[%s7 + $0x14] sm:$0xf]
        %v1162 = vld [vmem:[%s7 + $0x18] sm:$0xf]
        %v1163 = vld [vmem:[%s7 + $0x1c] sm:$0xf]
        %s1164 = scalar_lea.vmem %s7, 32
        %v1165 = vld [vmem:[%s1164] sm:$0xf]
        %v1166 = vld [vmem:[%s1164 + $0x4] sm:$0xf]
        %v1167 = vld [vmem:[%s1164 + $0x8] sm:$0xf]
        %v1168 = vld [vmem:[%s1164 + $0xc] sm:$0xf]
        %v1169 = vld [vmem:[%s1164 + $0x10] sm:$0xf]
        %v1170 = vld [vmem:[%s1164 + $0x14] sm:$0xf]
        %v1171 = vld [vmem:[%s1164 + $0x18] sm:$0xf]
        %v1172 = vld [vmem:[%s1164 + $0x1c] sm:$0xf]
        %v1181 = vunpack.c.l.b16 %v1165
        %v1182 = vunpack.c.l.b16 %v1166
        %v1183 = vunpack.c.l.b16 %v1167
        %v1184 = vunpack.c.l.b16 %v1168
        %v1185 = vunpack.c.l.b16 %v1169
        %v1186 = vunpack.c.l.b16 %v1170
        %v1187 = vunpack.c.l.b16 %v1171
        %v1188 = vunpack.c.l.b16 %v1172
        %v1189 = vpack.c.b16 %v1182, %v1181
        %v1190 = vpack.c.b16 %v1184, %v1183
        %v1191 = vpack.c.b16 %v1186, %v1185
        %v1192 = vpack.c.b16 %v1188, %v1187
        %v1198 = vsel %vm540, %v1051, 0
        %v1201 = vsel %vm540, %v1052, 0
        %1203 = vmatprep.subr.bf16.mxu0 0
        %1204 = vmatpush1.bf16.msra.mxu0 %v1189
        %1205 = vmatprep.subr.bf16.mxu0 0
        %1206 = vmatpush1.bf16.msra.mxu0 %v1190
        %1207 = vmatprep.subr.bf16.mxu0 0
        %1208 = vmatpush1.bf16.msra.mxu0 %v1191
        %1209 = vmatprep.subr.bf16.mxu0 0
        %1210 = vmatpush1.bf16.msra.mxu0 %v1192
        %1211 = vmatprep.subr.bf16.mxu0 0
        %1212 = vmatpush1.bf16.msra.mxu0 0
        %1213 = vmatprep.subr.bf16.mxu0 0
        %1214 = vmatpush1.bf16.msra.mxu0 0
        %1215 = vmatprep.subr.bf16.mxu0 0
        %1216 = vmatpush1.bf16.msra.mxu0 0
        %1217 = vmatprep.subr.bf16.mxu0 0
        %1218 = vmatpush1.bf16.msra.mxu0 0
        %1219 = vmatprep.subr.bf16.mxu0 0
        %1220 = vmatpush1.bf16.msra.mxu0 0
        %1221 = vmatprep.subr.bf16.mxu0 0
        %1222 = vmatpush1.bf16.msra.mxu0 0
        %1223 = vmatprep.subr.bf16.mxu0 0
        %1224 = vmatpush1.bf16.msra.mxu0 0
        %1225 = vmatprep.subr.bf16.mxu0 0
        %1226 = vmatpush1.bf16.msra.mxu0 0
        %1227 = vmatprep.subr.bf16.mxu0 0
        %1228 = vmatpush1.bf16.msra.mxu0 0
        %1229 = vmatprep.subr.bf16.mxu0 0
        %1230 = vmatpush1.bf16.msra.mxu0 0
        %1231 = vmatprep.subr.bf16.mxu0 0
        %1232 = vmatpush1.bf16.msra.mxu0 0
        %1233 = vmatprep.subr.bf16.mxu0 0
        %1234 = vmatpush1.bf16.msra.mxu0 0
        %1235 = vmatprep.mubr.bf16.mxu0 0
        %1236 = vmatmul.mubr.bf16.gmra.mrb[0].mxu0 %v1198
        %v1237 = vpop.f32.mrb[0].mxu0
        %v1238 = vadd.f32 0.0, %v1237
        %v1239 = vpop.f32.mrb[0].mxu0
        %v1240 = vpop.f32.mrb[0].mxu0
        %v1241 = vadd.f32 0.0, %v1240
        %v1242 = vpop.f32.mrb[0].mxu0
        %1243 = vmatprep.mubr.bf16.mxu0 0
        %1244 = vmatmul.mubr.bf16.gmra.mrb[0].mxu0 %v1201
        %v1245 = vpop.f32.mrb[0].mxu0
        %v1246 = vadd.f32 0.0, %v1245
        %v1247 = vpop.f32.mrb[0].mxu0
        %v1248 = vpop.f32.mrb[0].mxu0
        %v1249 = vadd.f32 0.0, %v1248
        %v1250 = vpop.f32.mrb[0].mxu0
        %1251 = vdwg.mxu0
        %v1260 = vunpack.c.l.b16 %v1156
        %v1261 = vunpack.c.l.b16 %v1157
        %v1262 = vunpack.c.l.b16 %v1158
        %v1263 = vunpack.c.l.b16 %v1159
        %v1264 = vunpack.c.l.b16 %v1160
        %v1265 = vunpack.c.l.b16 %v1161
        %v1266 = vunpack.c.l.b16 %v1162
        %v1267 = vunpack.c.l.b16 %v1163
        %v1268 = vpack.c.b16 %v1261, %v1260
        %v1269 = vpack.c.b16 %v1263, %v1262
        %v1270 = vpack.c.b16 %v1265, %v1264
        %v1271 = vpack.c.b16 %v1267, %v1266
        %v1277 = vsel %vm540, %v1103, 0
        %v1280 = vsel %vm540, %v1104, 0
        %1282 = vmatprep.subr.bf16.mxu0 0
        %1283 = vmatpush1.bf16.msra.mxu0 %v1268
        %1284 = vmatprep.subr.bf16.mxu0 0
        %1285 = vmatpush1.bf16.msra.mxu0 %v1269
        %1286 = vmatprep.subr.bf16.mxu0 0
        %1287 = vmatpush1.bf16.msra.mxu0 %v1270
        %1288 = vmatprep.subr.bf16.mxu0 0
        %1289 = vmatpush1.bf16.msra.mxu0 %v1271
        %1290 = vmatprep.subr.bf16.mxu0 0
        %1291 = vmatpush1.bf16.msra.mxu0 0
        %1292 = vmatprep.subr.bf16.mxu0 0
        %1293 = vmatpush1.bf16.msra.mxu0 0
        %1294 = vmatprep.subr.bf16.mxu0 0
        %1295 = vmatpush1.bf16.msra.mxu0 0
        %1296 = vmatprep.subr.bf16.mxu0 0
        %1297 = vmatpush1.bf16.msra.mxu0 0
        %1298 = vmatprep.subr.bf16.mxu0 0
        %1299 = vmatpush1.bf16.msra.mxu0 0
        %1300 = vmatprep.subr.bf16.mxu0 0
        %1301 = vmatpush1.bf16.msra.mxu0 0
        %1302 = vmatprep.subr.bf16.mxu0 0
        %1303 = vmatpush1.bf16.msra.mxu0 0
        %1304 = vmatprep.subr.bf16.mxu0 0
        %1305 = vmatpush1.bf16.msra.mxu0 0
        %1306 = vmatprep.subr.bf16.mxu0 0
        %1307 = vmatpush1.bf16.msra.mxu0 0
        %1308 = vmatprep.subr.bf16.mxu0 0
        %1309 = vmatpush1.bf16.msra.mxu0 0
        %1310 = vmatprep.subr.bf16.mxu0 0
        %1311 = vmatpush1.bf16.msra.mxu0 0
        %1312 = vmatprep.subr.bf16.mxu0 0
        %1313 = vmatpush1.bf16.msra.mxu0 0
        %1314 = vmatprep.mubr.bf16.mxu0 0
        %1315 = vmatmul.mubr.bf16.gmra.mrb[0].mxu0 %v1277
        %v1316 = vpop.f32.mrb[0].mxu0
        %v1317 = vadd.f32 %v1238, %v1316
        %v1318 = vpop.f32.mrb[0].mxu0
        %v1319 = vpop.f32.mrb[0].mxu0
        %v1320 = vadd.f32 %v1241, %v1319
        %v1321 = vpop.f32.mrb[0].mxu0
        %1322 = vmatprep.mubr.bf16.mxu0 0
        %1323 = vmatmul.mubr.bf16.gmra.mrb[0].mxu0 %v1280
        %v1324 = vpop.f32.mrb[0].mxu0
        %v1325 = vadd.f32 %v1246, %v1324
        %v1326 = vpop.f32.mrb[0].mxu0
        %v1327 = vpop.f32.mrb[0].mxu0
        %v1328 = vadd.f32 %v1249, %v1327
        %v1329 = vpop.f32.mrb[0].mxu0
        %1330 = vdwg.mxu0
        %s1331 = scalar_lea.vmem %s7, 64
        %v1332 = vld [vmem:[%s1331] sm:$0xf]
        %v1333 = vld [vmem:[%s1331 + $0x4] sm:$0xf]
        %v1334 = vld [vmem:[%s1331 + $0x8] sm:$0xf]
        %v1335 = vld [vmem:[%s1331 + $0xc] sm:$0xf]
        %v1336 = vld [vmem:[%s1331 + $0x10] sm:$0xf]
        %v1337 = vld [vmem:[%s1331 + $0x14] sm:$0xf]
        %v1338 = vld [vmem:[%s1331 + $0x18] sm:$0xf]
        %v1339 = vld [vmem:[%s1331 + $0x1c] sm:$0xf]
        %v1348 = vunpack.c.l.b16 %v1332
        %v1349 = vunpack.c.l.b16 %v1333
        %v1350 = vunpack.c.l.b16 %v1334
        %v1351 = vunpack.c.l.b16 %v1335
        %v1352 = vunpack.c.l.b16 %v1336
        %v1353 = vunpack.c.l.b16 %v1337
        %v1354 = vunpack.c.l.b16 %v1338
        %v1355 = vunpack.c.l.b16 %v1339
        %v1356 = vpack.c.b16 %v1349, %v1348
        %v1357 = vpack.c.b16 %v1351, %v1350
        %v1358 = vpack.c.b16 %v1353, %v1352
        %v1359 = vpack.c.b16 %v1355, %v1354
        %v1365 = vsel %vm540, %v1154, 0
        %v1368 = vsel %vm540, %v1155, 0
        %1370 = vmatprep.subr.bf16.mxu0 0
        %1371 = vmatpush1.bf16.msra.mxu0 %v1356
        %1372 = vmatprep.subr.bf16.mxu0 0
        %1373 = vmatpush1.bf16.msra.mxu0 %v1357
        %1374 = vmatprep.subr.bf16.mxu0 0
        %1375 = vmatpush1.bf16.msra.mxu0 %v1358
        %1376 = vmatprep.subr.bf16.mxu0 0
        %1377 = vmatpush1.bf16.msra.mxu0 %v1359
        %1378 = vmatprep.subr.bf16.mxu0 0
        %1379 = vmatpush1.bf16.msra.mxu0 0
        %1380 = vmatprep.subr.bf16.mxu0 0
        %1381 = vmatpush1.bf16.msra.mxu0 0
        %1382 = vmatprep.subr.bf16.mxu0 0
        %1383 = vmatpush1.bf16.msra.mxu0 0
        %1384 = vmatprep.subr.bf16.mxu0 0
        %1385 = vmatpush1.bf16.msra.mxu0 0
        %1386 = vmatprep.subr.bf16.mxu0 0
        %1387 = vmatpush1.bf16.msra.mxu0 0
        %1388 = vmatprep.subr.bf16.mxu0 0
        %1389 = vmatpush1.bf16.msra.mxu0 0
        %1390 = vmatprep.subr.bf16.mxu0 0
        %1391 = vmatpush1.bf16.msra.mxu0 0
        %1392 = vmatprep.subr.bf16.mxu0 0
        %1393 = vmatpush1.bf16.msra.mxu0 0
        %1394 = vmatprep.subr.bf16.mxu0 0
        %1395 = vmatpush1.bf16.msra.mxu0 0
        %1396 = vmatprep.subr.bf16.mxu0 0
        %1397 = vmatpush1.bf16.msra.mxu0 0
        %1398 = vmatprep.subr.bf16.mxu0 0
        %1399 = vmatpush1.bf16.msra.mxu0 0
        %1400 = vmatprep.subr.bf16.mxu0 0
        %1401 = vmatpush1.bf16.msra.mxu0 0
        %1402 = vmatprep.mubr.bf16.mxu0 0
        %1403 = vmatmul.mubr.bf16.gmra.mrb[0].mxu0 %v1365
        %v1404 = vpop.f32.mrb[0].mxu0
        %v1405 = vadd.f32 0.0, %v1404
        %v1406 = vpop.f32.mrb[0].mxu0
        %v1407 = vpop.f32.mrb[0].mxu0
        %v1408 = vadd.f32 0.0, %v1407
        %v1409 = vpop.f32.mrb[0].mxu0
        %1410 = vmatprep.mubr.bf16.mxu0 0
        %1411 = vmatmul.mubr.bf16.gmra.mrb[0].mxu0 %v1368
        %v1412 = vpop.f32.mrb[0].mxu0
        %v1413 = vadd.f32 0.0, %v1412
        %v1414 = vpop.f32.mrb[0].mxu0
        %v1415 = vpop.f32.mrb[0].mxu0
        %v1416 = vadd.f32 0.0, %v1415
        %v1417 = vpop.f32.mrb[0].mxu0
        %1418 = vdwg.mxu0
        %v1419 = vadd.f32 %v1317, %v1405
        %v1420 = vadd.f32 %v1320, %v1408
        %v1421 = vadd.f32 %v1325, %v1413
        %v1422 = vadd.f32 %v1328, %v1416
        %v1424 = vlaneseq
        %v1425 = vshrl.u32 %v1424, 7
        %v1426 = vsub.s32 0, %v1425
        %v1427 = vrot.slane %v1053, %v1426
        %v1429 = vadd.f32 %v1419, %v1427
        %v1430 = vadd.f32 %v1420, %v1427
        %v1431 = vadd.f32 %v1421, %v1427
        %v1432 = vadd.f32 %v1422, %v1427
        %v1433 = vmax.f32 %v1429, 0.0
        %v1434 = vmax.f32 %v1430, 0.0
        %v1435 = vmax.f32 %v1431, 0.0
        %v1436 = vmax.f32 %v1432, 0.0
        %1439 = vrot.lane.b32.xlu0 %v1435, 64
        %v1440 = vpop.permute.xlu0 %1439
        %1441 = vrot.lane.b32.xlu0 %v1436, 64
        %v1442 = vpop.permute.xlu0 %1441
        %v1445 = vsel %vm540, %v1433, %v1440
        %v1446 = vsel %vm540, %v1434, %v1442
        %1447 = vst [vmem:[%s367] sm:$0xff] %v1445
        %1448 = vst [vmem:[%s367 + $0x8] sm:$0xff] %v1446
        %s1449 = sand.u32 %s252, 1
        %s1450 = scalar_lea.sflag [#allocation3], %s1449
        %s1451 = sand.u32 %s252, 1
        %s1452 = smul.addr %s1451, 16
        %s1453 = scalar_lea.vmem [#allocation2], %s1452
        // Predicated region
        $region61: #{tpu_custom_call.1} parent=59 // pred_check
          %p1454 = pneg %p262
        $region62: #{tpu_custom_call.1} parent=59 // pred_check_branch
          %1456 = sbr.rel (%p1454) target = $region64
        $region63: #{tpu_custom_call.1} parent=59 // pred_region
          %s1458 = ssub.s32 256, 256
          %1459 = vsyncadd %s1450, %s1458
          %s1460 = smul.addr %s24, 2
          %s1461 = smul.addr %s1460, 128
          %s1462 = scalar_lea.hbm %s10, %s1461
          %s1463 = sshll.u32 %s1453, 4
          %s1464 = int_to_ptr.vmem [resolvable:$true] %s1463
          %1469 = dma.vmem_to_hbm [thread:$0]  %s1464, 256, %s1462, %s1450, 128, 128, 8
        $region64: #{tpu_custom_call.1} parent=59 // pred_fallthru
          _
      $region60: #{tpu_custom_call.1} parent=5 // pred_fallthru
        _
      %p1470 = scmp.le.s32.totalorder 2, %s19
      // Predicated region
      $region65: #{tpu_custom_call.1} parent=5 // pred_check
        %p1471 = pneg %p1470
      $region66: #{tpu_custom_call.1} parent=5 // pred_check_branch
        %1473 = sbr.rel (%p1471) target = $region68
      $region67: #{tpu_custom_call.1} parent=5 // pred_region
        %s1474 = ssub.s32 %s19, 2
        // Predicated region
        $region69: #{tpu_custom_call.1} parent=67 // pred_check
          %p1475 = pneg %p268
        $region70: #{tpu_custom_call.1} parent=67 // pred_check_branch
          %1477 = sbr.rel (%p1475) target = $region72
        $region71: #{tpu_custom_call.1} parent=67 // pred_region
          %s1478 = sand.u32 %s253, 1
          %s1479 = scalar_lea.sflag [#allocation3], %s1478
          %s1480 = sand.u32 %s253, 1
          %s1481 = smul.addr %s1480, 16
          %s1482 = scalar_lea.vmem [#allocation2], %s1481
          %1483 = dma.done %s1479, 256
        $region72: #{tpu_custom_call.1} parent=67 // pred_fallthru
          _
      $region68: #{tpu_custom_call.1} parent=5 // pred_fallthru
        _
    $region6: #{tpu_custom_call.1} parent=1 // loop_footer
      %s23 = sadd.s32 1, %s19
    $region7: #{tpu_custom_call.1} parent=1 // loop_footer_branch
      %18 = sbr.rel target = $region3
    $region8: #{tpu_custom_call.1} parent=1 // loop_exit
      _
    %1484 = vsyncpa [#allocation3], 1
    %s1485 = scalar_lea.sflag [#allocation3], 1
    %1486 = vsyncpa %s1485, 1

</llo_original>
